<compile_context>
chip_gen: v7x
topology: tpu7x:2x2x1
jax: 0.10.0
libtpu: 0.0.40
codegen_flags: <defaults>
</compile_context>

<pallas_src>
import math
import functools

import jax
import jax.numpy as jnp
from jax.experimental import pallas as pl
from jax.experimental.pallas import tpu as pltpu


LN_EPS = 1e-6  # annotated-transformer LayerNorm eps


# ----------------------------- in-kernel helpers -----------------------------

def _layernorm(x, gamma, beta, eps=LN_EPS):
    # x: (S, D) f32; gamma/beta: (1, D) f32
    mean = jnp.mean(x, axis=-1, keepdims=True)
    xc = x - mean
    var = jnp.mean(xc * xc, axis=-1, keepdims=True)
    inv = jax.lax.rsqrt(var + eps)
    return xc * inv * gamma + beta


def _rotate_half(x):
    # x: (..., Dh) -> [x[half:], x[:half]]  (sign is folded into the sin table)
    half = x.shape[-1] // 2
    return jnp.concatenate([x[..., half:], x[..., :half]], axis=-1)


# ----------------------------- encoder layer kernel --------------------------

def _encoder_layer_kernel(x_ref,
                          wqkv_ref, bqkv_ref,
                          wo_ref, bo_ref,
                          ln1_g_ref, ln1_b_ref,
                          w1_ref, b1_ref, w2_ref, b2_ref,
                          ln2_g_ref, ln2_b_ref,
                          cos_ref, sin_ref,
                          o_ref, *, n_heads):
    x = x_ref[0]                            # (S, D) f32 residual stream
    S, D = x.shape
    H = n_heads
    Dh = D // H
    scale = 1.0 / math.sqrt(Dh)

    # ---- sublayer 1: x + SelfAttn(LayerNorm(x)) ----
    xn = _layernorm(x, ln1_g_ref[...], ln1_b_ref[...])

    # fused QKV projection: single bf16 MXU matmul, f32 accumulation, one bias add
    qkv = jnp.dot(xn.astype(jnp.bfloat16), wqkv_ref[...],
                  preferred_element_type=jnp.float32) + bqkv_ref[...]      # (S, 3D)

    # relayout to head-major (3H, S, Dh) once (leading-axis stack, no per-head compute)
    qkv_h = jnp.stack([qkv[:, i * Dh:(i + 1) * Dh] for i in range(3 * H)], axis=0)
    q = qkv_h[:H]                           # (H, S, Dh)
    k = qkv_h[H:2 * H]
    v = qkv_h[2 * H:]

    # RoPE applied once for all heads; rotate-half sign pre-folded into sin table
    cos = cos_ref[...]                      # (S, Dh), broadcasts over heads
    sin = sin_ref[...]
    q = q * cos + _rotate_half(q) * sin
    k = k * cos + _rotate_half(k) * sin

    # batched-head attention: bf16 MXU inputs, f32 softmax statistics
    qb = (q * scale).astype(jnp.bfloat16)
    kb = k.astype(jnp.bfloat16)
    vb = v.astype(jnp.bfloat16)
    s = jnp.einsum('hqd,hkd->hqk', qb, kb,
                   preferred_element_type=jnp.float32)                     # (H, S, S)
    # src_mask is None in the reference forward() under test -> no masking.
    m = jnp.max(s, axis=-1, keepdims=True)
    p = jnp.exp(s - m)
    denom = jnp.sum(p, axis=-1, keepdims=True)
    p = p * pl.reciprocal(denom, approx=True)                              # EUP recip
    ctx = jnp.einsum('hqk,hkd->hqd', p.astype(jnp.bfloat16), vb,
                     preferred_element_type=jnp.float32)                   # (H, S, Dh)

    # output projection: each head hits its own (Dh, D) slab of W_o, then reduce —
    # no (S, D) concatenate materialization
    per_head = jnp.einsum('hsd,hdm->hsm', ctx.astype(jnp.bfloat16), wo_ref[...],
                          preferred_element_type=jnp.float32)              # (H, S, D)
    attn = jnp.sum(per_head, axis=0) + bo_ref[...]
    x = x + attn

    # ---- sublayer 2: x + FFN(LayerNorm(x)) ----
    xn2 = _layernorm(x, ln2_g_ref[...], ln2_b_ref[...])
    h1 = jnp.dot(xn2.astype(jnp.bfloat16), w1_ref[...],
                 preferred_element_type=jnp.float32) + b1_ref[...]
    h1 = jnp.maximum(h1, 0.0)
    ff = jnp.dot(h1.astype(jnp.bfloat16), w2_ref[...],
                 preferred_element_type=jnp.float32) + b2_ref[...]
    o_ref[0] = x + ff


def encoder_layer(x, lp, cos, sin, *, n_heads):
    B, S, D = x.shape
    F = lp["w1"].shape[1]
    Dh = D // n_heads

    full = lambda shape: pl.BlockSpec(shape, lambda b: (0,) * len(shape))
    in_specs = [
        pl.BlockSpec((1, S, D), lambda b: (b, 0, 0)),   # x
        full((D, 3 * D)), full((1, 3 * D)),             # fused wqkv, bqkv
        full((n_heads, Dh, D)), full((1, D)),           # wo (head-major), bo
        full((1, D)), full((1, D)),                     # ln1 gamma/beta
        full((D, F)), full((1, F)),                     # w1, b1
        full((F, D)), full((1, D)),                     # w2, b2
        full((1, D)), full((1, D)),                     # ln2 gamma/beta
        full((S, Dh)), full((S, Dh)),                   # rope cos / signed sin
    ]

    kernel = functools.partial(_encoder_layer_kernel, n_heads=n_heads)
    return pl.pallas_call(
        kernel,
        out_shape=jax.ShapeDtypeStruct((B, S, D), jnp.float32),
        grid=(B,),
        in_specs=in_specs,
        out_specs=pl.BlockSpec((1, S, D), lambda b: (b, 0, 0)),
        compiler_params=pltpu.CompilerParams(dimension_semantics=("parallel",)),
    )(x,
      lp["wqkv"], lp["bqkv"], lp["wo"], lp["bo"],
      lp["ln1_g"], lp["ln1_b"],
      lp["w1"], lp["b1"], lp["w2"], lp["b2"],
      lp["ln2_g"], lp["ln2_b"],
      cos, sin)


# ----------------------------- generator kernel ------------------------------
# Final encoder LayerNorm fused with the generator: Linear(D, V) + log_softmax.
# Vocab is padded to a multiple of 128 lanes (padded columns carry a -1e30 bias
# so they drop out of the log-sum-exp and the store stays lane-dense).

def _generator_kernel(x_ref, lng_ref, lnb_ref, wg_ref, bg_ref, o_ref):
    x = x_ref[0]                                                 # (S_tile, D)
    xn = _layernorm(x, lng_ref[...], lnb_ref[...])
    logits = jnp.dot(xn.astype(jnp.bfloat16), wg_ref[...],
                     preferred_element_type=jnp.float32) + bg_ref[...]   # (S_tile, Vp)
    m = jnp.max(logits, axis=-1, keepdims=True)
    z = logits - m
    lse = jnp.log(jnp.sum(jnp.exp(z), axis=-1, keepdims=True))
    o_ref[0] = z - lse                                           # log-probs


def _pick_seq_tile(S, max_tile=512):
    if S <= max_tile:
        return S
    for t in range(max_tile, 7, -8):
        if S % t == 0:
            return t
    return S


def generator(x, gp, vocab):
    B, S, D = x.shape
    Vp = gp["wg"].shape[1]            # padded to a multiple of 128
    st = _pick_seq_tile(S)
    full = lambda shape: pl.BlockSpec(shape, lambda b, s: (0,) * len(shape))
    out = pl.pallas_call(
        _generator_kernel,
        out_shape=jax.ShapeDtypeStruct((B, S, Vp), jnp.float32),
        grid=(B, S // st),
        in_specs=[
            pl.BlockSpec((1, st, D), lambda b, s: (b, s, 0)),
            full((1, D)), full((1, D)),
            full((D, Vp)), full((1, Vp)),
        ],
        out_specs=pl.BlockSpec((1, st, Vp), lambda b, s: (b, s, 0)),
        compiler_params=pltpu.CompilerParams(
            dimension_semantics=("parallel", "parallel")),
    )(x, gp["lnf_g"], gp["lnf_b"], gp["wg"], gp["bg"])
    return out[..., :vocab]           # drop lane padding


# ----------------------------- model glue ------------------------------------

def sinusoidal_pe(seq_len, d_model):
    pos = jnp.arange(seq_len, dtype=jnp.float32)[:, None]
    i = jnp.arange(0, d_model, 2, dtype=jnp.float32)[None, :]
    div = jnp.exp(-math.log(10000.0) * i / d_model)
    pe = jnp.zeros((seq_len, d_model), dtype=jnp.float32)
    pe = pe.at[:, 0::2].set(jnp.sin(pos * div))
    pe = pe.at[:, 1::2].set(jnp.cos(pos * div))
    return pe


def rope_tables(seq_len, head_dim, mz_scale=1.0):
    # TODO(synk): `update_mz(mz)` mutates the RoPE position scale at runtime in
    # the reference; here it is fixed at construction via mz_scale.
    half = head_dim // 2
    inv_freq = 1.0 / (10000.0 ** (jnp.arange(0, half, dtype=jnp.float32) / half))
    pos = jnp.arange(seq_len, dtype=jnp.float32) * mz_scale
    freqs = pos[:, None] * inv_freq[None, :]          # (S, half)
    emb = jnp.concatenate([freqs, freqs], axis=-1)    # (S, head_dim)
    cos = jnp.cos(emb)
    sin = jnp.sin(emb)
    # fold rotate-half sign into sin:  rope(x) = x*cos + rotate_half(x)*sin_signed
    sin_signed = jnp.concatenate([-sin[:, :half], sin[:, half:]], axis=-1)
    return cos, sin_signed


def init_params(key, vocab, d_model, n_heads, d_ff, n_layers):
    assert d_model % n_heads == 0
    dh = d_model // n_heads
    vpad = ((vocab + 127) // 128) * 128
    keys = jax.random.split(key, 2 + 4 * n_layers)
    kidx = iter(range(len(keys)))
    nrm = lambda shape, scale=0.02: scale * jax.random.normal(
        keys[next(kidx)], shape, dtype=jnp.float32)

    wg = nrm((d_model, vocab))
    params = {
        "emb": nrm((vocab, d_model), 1.0 / math.sqrt(d_model)),
        "layers": [],
        "gen": {
            # vocab padded to lane multiple: zero weights, -1e30 bias in padding
            "wg": jnp.pad(wg, ((0, 0), (0, vpad - vocab))).astype(jnp.bfloat16),
            "bg": jnp.pad(jnp.zeros((1, vocab), jnp.float32),
                          ((0, 0), (0, vpad - vocab)), constant_values=-1e30),
            "lnf_g": jnp.ones((1, d_model), jnp.float32),
            "lnf_b": jnp.zeros((1, d_model), jnp.float32),
        },
    }
    for _ in range(n_layers):
        wqkv = nrm((d_model, 3 * d_model))          # fused [Wq | Wk | Wv]
        wo = nrm((d_model, d_model))
        lp = {
            "wqkv": wqkv.astype(jnp.bfloat16),
            "bqkv": jnp.zeros((1, 3 * d_model), jnp.float32),
            # W_o stored head-major (H, Dh, D) so each head hits its own slab
            "wo": wo.reshape(n_heads, dh, d_model).astype(jnp.bfloat16),
            "bo": jnp.zeros((1, d_model), jnp.float32),
            "ln1_g": jnp.ones((1, d_model), jnp.float32),
            "ln1_b": jnp.zeros((1, d_model), jnp.float32),
            "w1": nrm((d_model, d_ff)).astype(jnp.bfloat16),
            "b1": jnp.zeros((1, d_ff), jnp.float32),
            "w2": nrm((d_ff, d_model)).astype(jnp.bfloat16),
            "b2": jnp.zeros((1, d_model), jnp.float32),
            "ln2_g": jnp.ones((1, d_model), jnp.float32),
            "ln2_b": jnp.zeros((1, d_model), jnp.float32),
        }
        params["layers"].append(lp)
    return params


def transformer_forward(params, src, *, n_heads, vocab):
    # src: (B, S) int32 token ids.  src_mask=None (as in the reference forward).
    B, S = src.shape
    d_model = params["emb"].shape[1]
    head_dim = d_model // n_heads

    # src_embed: Embeddings * sqrt(d_model) + positional encoding  (glue, f32)
    x = params["emb"][src] * math.sqrt(d_model) + sinusoidal_pe(S, d_model)[None]
    x = x.astype(jnp.float32)

    cos, sin_signed = rope_tables(S, head_dim)

    # encoder stack (each layer is one fused Pallas kernel call)
    for lp in params["layers"]:
        x = encoder_layer(x, lp, cos, sin_signed, n_heads=n_heads)

    # final layernorm + generator (fused Pallas kernel) -> log-probs
    return generator(x, params["gen"], vocab)


# ----------------------------- main ------------------------------------------

if __name__ == "__main__":
    B, S = 2, 8
    D_MODEL, N_HEADS, D_FF = 32, 4, 64
    VOCAB, N_LAYERS = 50, 2

    key = jax.random.PRNGKey(0)
    k_param, k_src = jax.random.split(key)

    params = init_params(k_param, VOCAB, D_MODEL, N_HEADS, D_FF, N_LAYERS)
    src = jax.random.randint(k_src, (B, S), 0, VOCAB, dtype=jnp.int32)

    fwd = jax.jit(functools.partial(transformer_forward,
                                    n_heads=N_HEADS, vocab=VOCAB))
    out = jax.block_until_ready(fwd(params, src))

    assert out.shape == (B, S, VOCAB), out.shape
    assert out.dtype == jnp.float32
    # log_softmax rows must sum to 1 in prob space
    assert bool(jnp.allclose(jnp.sum(jnp.exp(out), axis=-1), 1.0, atol=1e-3))

    print("KERNEL_OK")
</pallas_src>

<mosaic_0001>
module attributes {stable_mosaic.version = 11 : i64} {
  func.func @_generator_kernel(%arg0: i32, %arg1: i32, %arg2: memref<1x8x32xf32, #tpu.memory_space<vmem>>, %arg3: memref<1x32xf32, #tpu.memory_space<vmem>>, %arg4: memref<1x32xf32, #tpu.memory_space<vmem>>, %arg5: memref<32x128xbf16, #tpu.memory_space<vmem>>, %arg6: memref<1x128xf32, #tpu.memory_space<vmem>>, %arg7: memref<1x8x128xf32, #tpu.memory_space<vmem>>) attributes {dimension_semantics = [#tpu.dimension_semantics<parallel>, #tpu.dimension_semantics<parallel>], iteration_bounds = array<i64: 2, 1>, scalar_prefetch = 0 : i64, scratch_operands = 0 : i64, tpu.core_type = #tpu.core_type<tc>, window_params = [{transform_indices = @transform_0, window_bounds = array<i64: 1, 8, 32>}, {pipeline_mode = #tpu.pipeline_mode<synchronous>, transform_indices = @transform_1, window_bounds = array<i64: 1, 32>}, {pipeline_mode = #tpu.pipeline_mode<synchronous>, transform_indices = @transform_2, window_bounds = array<i64: 1, 32>}, {pipeline_mode = #tpu.pipeline_mode<synchronous>, transform_indices = @transform_3, window_bounds = array<i64: 32, 128>}, {pipeline_mode = #tpu.pipeline_mode<synchronous>, transform_indices = @transform_4, window_bounds = array<i64: 1, 128>}, {transform_indices = @transform_5, window_bounds = array<i64: 1, 8, 128>}]} {
    %c0 = arith.constant 0 : index
    %c0_0 = arith.constant 0 : index
    %c0_1 = arith.constant 0 : index
    %0 = vector.load %arg2[%c0, %c0_0, %c0_1] : memref<1x8x32xf32, #tpu.memory_space<vmem>>, vector<1x8x32xf32>
    %1 = vector.shape_cast %0 : vector<1x8x32xf32> to vector<8x32xf32>
    %c0_2 = arith.constant 0 : index
    %c0_3 = arith.constant 0 : index
    %2 = vector.load %arg3[%c0_2, %c0_3] : memref<1x32xf32, #tpu.memory_space<vmem>>, vector<1x32xf32>
    %c0_4 = arith.constant 0 : index
    %c0_5 = arith.constant 0 : index
    %3 = vector.load %arg4[%c0_4, %c0_5] : memref<1x32xf32, #tpu.memory_space<vmem>>, vector<1x32xf32>
    %cst = arith.constant dense<0.000000e+00> : vector<8xf32>
    %4 = vector.multi_reduction <add>, %1, %cst [1] : vector<8x32xf32> to vector<8xf32>
    %5 = vector.shape_cast %4 : vector<8xf32> to vector<8x1xf32>
    %cst_6 = arith.constant 3.200000e+01 : f32
    %6 = vector.broadcast %cst_6 : f32 to vector<8x1xf32>
    %7 = arith.divf %5, %6 : vector<8x1xf32>
    %8 = vector.broadcast %7 : vector<8x1xf32> to vector<8x32xf32>
    %9 = arith.subf %1, %8 : vector<8x32xf32>
    %10 = arith.mulf %9, %9 : vector<8x32xf32>
    %cst_7 = arith.constant dense<0.000000e+00> : vector<8xf32>
    %11 = vector.multi_reduction <add>, %10, %cst_7 [1] : vector<8x32xf32> to vector<8xf32>
    %12 = vector.shape_cast %11 : vector<8xf32> to vector<8x1xf32>
    %cst_8 = arith.constant 3.200000e+01 : f32
    %13 = vector.broadcast %cst_8 : f32 to vector<8x1xf32>
    %14 = arith.divf %12, %13 : vector<8x1xf32>
    %cst_9 = arith.constant 9.99999997E-7 : f32
    %15 = vector.broadcast %cst_9 : f32 to vector<8x1xf32>
    %16 = arith.addf %14, %15 : vector<8x1xf32>
    %17 = math.rsqrt %16 : vector<8x1xf32>
    %18 = vector.broadcast %17 : vector<8x1xf32> to vector<8x32xf32>
    %19 = arith.mulf %9, %18 : vector<8x32xf32>
    %20 = vector.broadcast %2 : vector<1x32xf32> to vector<8x32xf32>
    %21 = arith.mulf %19, %20 : vector<8x32xf32>
    %22 = vector.broadcast %3 : vector<1x32xf32> to vector<8x32xf32>
    %23 = arith.addf %21, %22 : vector<8x32xf32>
    %24 = arith.truncf %23 : vector<8x32xf32> to vector<8x32xbf16>
    %c0_10 = arith.constant 0 : index
    %c0_11 = arith.constant 0 : index
    %25 = vector.load %arg5[%c0_10, %c0_11] : memref<32x128xbf16, #tpu.memory_space<vmem>>, vector<32x128xbf16>
    %cst_12 = arith.constant dense<0.000000e+00> : vector<8x128xf32>
    %26 = tpu.matmul %24, %25, %cst_12 {dimension_numbers = #tpu.dot_dimension_numbers<[1], [0], [0], [1], [0, 0, 1, 1], [], []>} : vector<8x32xbf16>, vector<32x128xbf16>, vector<8x128xf32> -> vector<8x128xf32>
    %c0_13 = arith.constant 0 : index
    %c0_14 = arith.constant 0 : index
    %27 = vector.load %arg6[%c0_13, %c0_14] : memref<1x128xf32, #tpu.memory_space<vmem>>, vector<1x128xf32>
    %28 = vector.broadcast %27 : vector<1x128xf32> to vector<8x128xf32>
    %29 = arith.addf %26, %28 : vector<8x128xf32>
    %cst_15 = arith.constant dense<0xFF800000> : vector<8xf32>
    %30 = vector.multi_reduction <maximumf>, %29, %cst_15 [1] : vector<8x128xf32> to vector<8xf32>
    %31 = vector.shape_cast %30 : vector<8xf32> to vector<8x1xf32>
    %32 = vector.broadcast %31 : vector<8x1xf32> to vector<8x128xf32>
    %33 = arith.subf %29, %32 : vector<8x128xf32>
    %34 = math.exp %33 : vector<8x128xf32>
    %cst_16 = arith.constant dense<0.000000e+00> : vector<8xf32>
    %35 = vector.multi_reduction <add>, %34, %cst_16 [1] : vector<8x128xf32> to vector<8xf32>
    %36 = vector.shape_cast %35 : vector<8xf32> to vector<8x1xf32>
    %37 = math.log %36 : vector<8x1xf32>
    %38 = vector.broadcast %37 : vector<8x1xf32> to vector<8x128xf32>
    %39 = arith.subf %33, %38 : vector<8x128xf32>
    %c0_17 = arith.constant 0 : index
    %c0_18 = arith.constant 0 : index
    %c0_19 = arith.constant 0 : index
    %40 = vector.load %arg7[%c0_17, %c0_18, %c0_19] : memref<1x8x128xf32, #tpu.memory_space<vmem>>, vector<1x8x128xf32>
    %41 = vector.shape_cast %40 : vector<1x8x128xf32> to vector<8x128xf32>
    %42 = vector.shape_cast %39 : vector<8x128xf32> to vector<1x8x128xf32>
    tpu.vector_store %arg7[%c0_17, %c0_18, %c0_19], %42 {strides = array<i32>} : memref<1x8x128xf32, #tpu.memory_space<vmem>>, vector<1x8x128xf32>,
    return
  }
  func.func @transform_0(%arg0: i32, %arg1: i32) -> (i32, i32, i32) {
    %c0_i32 = arith.constant 0 : i32
    %c0_i32_0 = arith.constant 0 : i32
    return %arg0, %arg1, %c0_i32 : i32, i32, i32
  }
  func.func @transform_1(%arg0: i32, %arg1: i32) -> (i32, i32) {
    %c0_i32 = arith.constant 0 : i32
    %c0_i32_0 = arith.constant 0 : i32
    %c0_i32_1 = arith.constant 0 : i32
    return %c0_i32, %c0_i32_0 : i32, i32
  }
  func.func @transform_2(%arg0: i32, %arg1: i32) -> (i32, i32) {
    %c0_i32 = arith.constant 0 : i32
    %c0_i32_0 = arith.constant 0 : i32
    %c0_i32_1 = arith.constant 0 : i32
    return %c0_i32, %c0_i32_0 : i32, i32
  }
  func.func @transform_3(%arg0: i32, %arg1: i32) -> (i32, i32) {
    %c0_i32 = arith.constant 0 : i32
    %c0_i32_0 = arith.constant 0 : i32
    %c0_i32_1 = arith.constant 0 : i32
    return %c0_i32, %c0_i32_0 : i32, i32
  }
  func.func @transform_4(%arg0: i32, %arg1: i32) -> (i32, i32) {
    %c0_i32 = arith.constant 0 : i32
    %c0_i32_0 = arith.constant 0 : i32
    %c0_i32_1 = arith.constant 0 : i32
    return %c0_i32, %c0_i32_0 : i32, i32
  }
  func.func @transform_5(%arg0: i32, %arg1: i32) -> (i32, i32, i32) {
    %c0_i32 = arith.constant 0 : i32
    %c0_i32_0 = arith.constant 0 : i32
    return %arg0, %arg1, %c0_i32 : i32, i32, i32
  }
}

module attributes {stable_mosaic.version = 11 : i64} {
  func.func @_encoder_layer_kernel(%arg0: i32, %arg1: memref<1x8x32xf32, #tpu.memory_space<vmem>>, %arg2: memref<32x96xbf16, #tpu.memory_space<vmem>>, %arg3: memref<1x96xf32, #tpu.memory_space<vmem>>, %arg4: memref<4x8x32xbf16, #tpu.memory_space<vmem>>, %arg5: memref<1x32xf32, #tpu.memory_space<vmem>>, %arg6: memref<1x32xf32, #tpu.memory_space<vmem>>, %arg7: memref<1x32xf32, #tpu.memory_space<vmem>>, %arg8: memref<32x64xbf16, #tpu.memory_space<vmem>>, %arg9: memref<1x64xf32, #tpu.memory_space<vmem>>, %arg10: memref<64x32xbf16, #tpu.memory_space<vmem>>, %arg11: memref<1x32xf32, #tpu.memory_space<vmem>>, %arg12: memref<1x32xf32, #tpu.memory_space<vmem>>, %arg13: memref<1x32xf32, #tpu.memory_space<vmem>>, %arg14: memref<8x8xf32, #tpu.memory_space<vmem>>, %arg15: memref<8x8xf32, #tpu.memory_space<vmem>>, %arg16: memref<1x8x32xf32, #tpu.memory_space<vmem>>) attributes {dimension_semantics = [#tpu.dimension_semantics<parallel>], iteration_bounds = array<i64: 2>, scalar_prefetch = 0 : i64, scratch_operands = 0 : i64, tpu.core_type = #tpu.core_type<tc>, window_params = [{transform_indices = @transform_0, window_bounds = array<i64: 1, 8, 32>}, {pipeline_mode = #tpu.pipeline_mode<synchronous>, transform_indices = @transform_1, window_bounds = array<i64: 32, 96>}, {pipeline_mode = #tpu.pipeline_mode<synchronous>, transform_indices = @transform_2, window_bounds = array<i64: 1, 96>}, {pipeline_mode = #tpu.pipeline_mode<synchronous>, transform_indices = @transform_3, window_bounds = array<i64: 4, 8, 32>}, {pipeline_mode = #tpu.pipeline_mode<synchronous>, transform_indices = @transform_4, window_bounds = array<i64: 1, 32>}, {pipeline_mode = #tpu.pipeline_mode<synchronous>, transform_indices = @transform_5, window_bounds = array<i64: 1, 32>}, {pipeline_mode = #tpu.pipeline_mode<synchronous>, transform_indices = @transform_6, window_bounds = array<i64: 1, 32>}, {pipeline_mode = #tpu.pipeline_mode<synchronous>, transform_indices = @transform_7, window_bounds = array<i64: 32, 64>}, {pipeline_mode = #tpu.pipeline_mode<synchronous>, transform_indices = @transform_8, window_bounds = array<i64: 1, 64>}, {pipeline_mode = #tpu.pipeline_mode<synchronous>, transform_indices = @transform_9, window_bounds = array<i64: 64, 32>}, {pipeline_mode = #tpu.pipeline_mode<synchronous>, transform_indices = @transform_10, window_bounds = array<i64: 1, 32>}, {pipeline_mode = #tpu.pipeline_mode<synchronous>, transform_indices = @transform_11, window_bounds = array<i64: 1, 32>}, {pipeline_mode = #tpu.pipeline_mode<synchronous>, transform_indices = @transform_12, window_bounds = array<i64: 1, 32>}, {pipeline_mode = #tpu.pipeline_mode<synchronous>, transform_indices = @transform_13, window_bounds = array<i64: 8, 8>}, {pipeline_mode = #tpu.pipeline_mode<synchronous>, transform_indices = @transform_14, window_bounds = array<i64: 8, 8>}, {transform_indices = @transform_15, window_bounds = array<i64: 1, 8, 32>}]} {
    %c0 = arith.constant 0 : index
    %c0_0 = arith.constant 0 : index
    %c0_1 = arith.constant 0 : index
    %0 = vector.load %arg1[%c0, %c0_0, %c0_1] : memref<1x8x32xf32, #tpu.memory_space<vmem>>, vector<1x8x32xf32>
    %1 = vector.shape_cast %0 : vector<1x8x32xf32> to vector<8x32xf32>
    %c0_2 = arith.constant 0 : index
    %c0_3 = arith.constant 0 : index
    %2 = vector.load %arg6[%c0_2, %c0_3] : memref<1x32xf32, #tpu.memory_space<vmem>>, vector<1x32xf32>
    %c0_4 = arith.constant 0 : index
    %c0_5 = arith.constant 0 : index
    %3 = vector.load %arg7[%c0_4, %c0_5] : memref<1x32xf32, #tpu.memory_space<vmem>>, vector<1x32xf32>
    %cst = arith.constant dense<0.000000e+00> : vector<8xf32>
    %4 = vector.multi_reduction <add>, %1, %cst [1] : vector<8x32xf32> to vector<8xf32>
    %5 = vector.shape_cast %4 : vector<8xf32> to vector<8x1xf32>
    %cst_6 = arith.constant 3.200000e+01 : f32
    %6 = vector.broadcast %cst_6 : f32 to vector<8x1xf32>
    %7 = arith.divf %5, %6 : vector<8x1xf32>
    %8 = vector.broadcast %7 : vector<8x1xf32> to vector<8x32xf32>
    %9 = arith.subf %1, %8 : vector<8x32xf32>
    %10 = arith.mulf %9, %9 : vector<8x32xf32>
    %cst_7 = arith.constant dense<0.000000e+00> : vector<8xf32>
    %11 = vector.multi_reduction <add>, %10, %cst_7 [1] : vector<8x32xf32> to vector<8xf32>
    %12 = vector.shape_cast %11 : vector<8xf32> to vector<8x1xf32>
    %cst_8 = arith.constant 3.200000e+01 : f32
    %13 = vector.broadcast %cst_8 : f32 to vector<8x1xf32>
    %14 = arith.divf %12, %13 : vector<8x1xf32>
    %cst_9 = arith.constant 9.99999997E-7 : f32
    %15 = vector.broadcast %cst_9 : f32 to vector<8x1xf32>
    %16 = arith.addf %14, %15 : vector<8x1xf32>
    %17 = math.rsqrt %16 : vector<8x1xf32>
    %18 = vector.broadcast %17 : vector<8x1xf32> to vector<8x32xf32>
    %19 = arith.mulf %9, %18 : vector<8x32xf32>
    %20 = vector.broadcast %2 : vector<1x32xf32> to vector<8x32xf32>
    %21 = arith.mulf %19, %20 : vector<8x32xf32>
    %22 = vector.broadcast %3 : vector<1x32xf32> to vector<8x32xf32>
    %23 = arith.addf %21, %22 : vector<8x32xf32>
    %24 = arith.truncf %23 : vector<8x32xf32> to vector<8x32xbf16>
    %c0_10 = arith.constant 0 : index
    %c0_11 = arith.constant 0 : index
    %25 = vector.load %arg2[%c0_10, %c0_11] : memref<32x96xbf16, #tpu.memory_space<vmem>>, vector<32x96xbf16>
    %cst_12 = arith.constant dense<0.000000e+00> : vector<8x96xf32>
    %26 = tpu.matmul %24, %25, %cst_12 {dimension_numbers = #tpu.dot_dimension_numbers<[1], [0], [0], [1], [0, 0, 1, 1], [], []>} : vector<8x32xbf16>, vector<32x96xbf16>, vector<8x96xf32> -> vector<8x96xf32>
    %c0_13 = arith.constant 0 : index
    %c0_14 = arith.constant 0 : index
    %27 = vector.load %arg3[%c0_13, %c0_14] : memref<1x96xf32, #tpu.memory_space<vmem>>, vector<1x96xf32>
    %28 = vector.broadcast %27 : vector<1x96xf32> to vector<8x96xf32>
    %29 = arith.addf %26, %28 : vector<8x96xf32>
    %30 = vector.extract_strided_slice %29 {offsets = [0, 0], sizes = [8, 8], strides = [1, 1]} : vector<8x96xf32> to vector<8x8xf32>
    %31 = vector.extract_strided_slice %29 {offsets = [0, 8], sizes = [8, 8], strides = [1, 1]} : vector<8x96xf32> to vector<8x8xf32>
    %32 = vector.extract_strided_slice %29 {offsets = [0, 16], sizes = [8, 8], strides = [1, 1]} : vector<8x96xf32> to vector<8x8xf32>
    %33 = vector.extract_strided_slice %29 {offsets = [0, 24], sizes = [8, 8], strides = [1, 1]} : vector<8x96xf32> to vector<8x8xf32>
    %34 = vector.extract_strided_slice %29 {offsets = [0, 32], sizes = [8, 8], strides = [1, 1]} : vector<8x96xf32> to vector<8x8xf32>
    %35 = vector.extract_strided_slice %29 {offsets = [0, 40], sizes = [8, 8], strides = [1, 1]} : vector<8x96xf32> to vector<8x8xf32>
    %36 = vector.extract_strided_slice %29 {offsets = [0, 48], sizes = [8, 8], strides = [1, 1]} : vector<8x96xf32> to vector<8x8xf32>
    %37 = vector.extract_strided_slice %29 {offsets = [0, 56], sizes = [8, 8], strides = [1, 1]} : vector<8x96xf32> to vector<8x8xf32>
    %38 = vector.extract_strided_slice %29 {offsets = [0, 64], sizes = [8, 8], strides = [1, 1]} : vector<8x96xf32> to vector<8x8xf32>
    %39 = vector.extract_strided_slice %29 {offsets = [0, 72], sizes = [8, 8], strides = [1, 1]} : vector<8x96xf32> to vector<8x8xf32>
    %40 = vector.extract_strided_slice %29 {offsets = [0, 80], sizes = [8, 8], strides = [1, 1]} : vector<8x96xf32> to vector<8x8xf32>
    %41 = vector.extract_strided_slice %29 {offsets = [0, 88], sizes = [8, 8], strides = [1, 1]} : vector<8x96xf32> to vector<8x8xf32>
    %42 = vector.shape_cast %30 : vector<8x8xf32> to vector<1x8x8xf32>
    %43 = vector.shape_cast %31 : vector<8x8xf32> to vector<1x8x8xf32>
    %44 = vector.shape_cast %32 : vector<8x8xf32> to vector<1x8x8xf32>
    %45 = vector.shape_cast %33 : vector<8x8xf32> to vector<1x8x8xf32>
    %46 = vector.shape_cast %34 : vector<8x8xf32> to vector<1x8x8xf32>
    %47 = vector.shape_cast %35 : vector<8x8xf32> to vector<1x8x8xf32>
    %48 = vector.shape_cast %36 : vector<8x8xf32> to vector<1x8x8xf32>
    %49 = vector.shape_cast %37 : vector<8x8xf32> to vector<1x8x8xf32>
    %50 = vector.shape_cast %38 : vector<8x8xf32> to vector<1x8x8xf32>
    %51 = vector.shape_cast %39 : vector<8x8xf32> to vector<1x8x8xf32>
    %52 = vector.shape_cast %40 : vector<8x8xf32> to vector<1x8x8xf32>
    %53 = vector.shape_cast %41 : vector<8x8xf32> to vector<1x8x8xf32>
    %54 = tpu.concatenate %42, %43, %44, %45, %46, %47, %48, %49, %50, %51, %52, %53 in 0 : vector<1x8x8xf32>, vector<1x8x8xf32>, vector<1x8x8xf32>, vector<1x8x8xf32>, vector<1x8x8xf32>, vector<1x8x8xf32>, vector<1x8x8xf32>, vector<1x8x8xf32>, vector<1x8x8xf32>, vector<1x8x8xf32>, vector<1x8x8xf32>, vector<1x8x8xf32> -> vector<12x8x8xf32>
    %55 = vector.extract_strided_slice %54 {offsets = [0, 0, 0], sizes = [4, 8, 8], strides = [1, 1, 1]} : vector<12x8x8xf32> to vector<4x8x8xf32>
    %56 = vector.extract_strided_slice %54 {offsets = [4, 0, 0], sizes = [4, 8, 8], strides = [1, 1, 1]} : vector<12x8x8xf32> to vector<4x8x8xf32>
    %57 = vector.extract_strided_slice %54 {offsets = [8, 0, 0], sizes = [4, 8, 8], strides = [1, 1, 1]} : vector<12x8x8xf32> to vector<4x8x8xf32>
    %c0_15 = arith.constant 0 : index
    %c0_16 = arith.constant 0 : index
    %58 = vector.load %arg14[%c0_15, %c0_16] : memref<8x8xf32, #tpu.memory_space<vmem>>, vector<8x8xf32>
    %c0_17 = arith.constant 0 : index
    %c0_18 = arith.constant 0 : index
    %59 = vector.load %arg15[%c0_17, %c0_18] : memref<8x8xf32, #tpu.memory_space<vmem>>, vector<8x8xf32>
    %60 = vector.shape_cast %58 : vector<8x8xf32> to vector<1x8x8xf32>
    %61 = vector.broadcast %60 : vector<1x8x8xf32> to vector<4x8x8xf32>
    %62 = arith.mulf %55, %61 : vector<4x8x8xf32>
    %63 = vector.extract_strided_slice %55 {offsets = [0, 0, 4], sizes = [4, 8, 4], strides = [1, 1, 1]} : vector<4x8x8xf32> to vector<4x8x4xf32>
    %64 = vector.extract_strided_slice %55 {offsets = [0, 0, 0], sizes = [4, 8, 4], strides = [1, 1, 1]} : vector<4x8x8xf32> to vector<4x8x4xf32>
    %65 = tpu.concatenate %63, %64 in 2 : vector<4x8x4xf32>, vector<4x8x4xf32> -> vector<4x8x8xf32>
    %66 = vector.shape_cast %59 : vector<8x8xf32> to vector<1x8x8xf32>
    %67 = vector.broadcast %66 : vector<1x8x8xf32> to vector<4x8x8xf32>
    %68 = arith.mulf %65, %67 : vector<4x8x8xf32>
    %69 = arith.addf %62, %68 : vector<4x8x8xf32>
    %70 = vector.shape_cast %58 : vector<8x8xf32> to vector<1x8x8xf32>
    %71 = vector.broadcast %70 : vector<1x8x8xf32> to vector<4x8x8xf32>
    %72 = arith.mulf %56, %71 : vector<4x8x8xf32>
    %73 = vector.extract_strided_slice %56 {offsets = [0, 0, 4], sizes = [4, 8, 4], strides = [1, 1, 1]} : vector<4x8x8xf32> to vector<4x8x4xf32>
    %74 = vector.extract_strided_slice %56 {offsets = [0, 0, 0], sizes = [4, 8, 4], strides = [1, 1, 1]} : vector<4x8x8xf32> to vector<4x8x4xf32>
    %75 = tpu.concatenate %73, %74 in 2 : vector<4x8x4xf32>, vector<4x8x4xf32> -> vector<4x8x8xf32>
    %76 = vector.shape_cast %59 : vector<8x8xf32> to vector<1x8x8xf32>
    %77 = vector.broadcast %76 : vector<1x8x8xf32> to vector<4x8x8xf32>
    %78 = arith.mulf %75, %77 : vector<4x8x8xf32>
    %79 = arith.addf %72, %78 : vector<4x8x8xf32>
    %cst_19 = arith.constant 0.353553385 : f32
    %80 = vector.broadcast %cst_19 : f32 to vector<4x8x8xf32>
    %81 = arith.mulf %69, %80 : vector<4x8x8xf32>
    %82 = arith.truncf %81 : vector<4x8x8xf32> to vector<4x8x8xbf16>
    %83 = arith.truncf %79 : vector<4x8x8xf32> to vector<4x8x8xbf16>
    %84 = arith.truncf %57 : vector<4x8x8xf32> to vector<4x8x8xbf16>
    "tpu.trace_start"() <{level = 10 : i32, message = "hqd,hkd->hqk"}> : () -> ()
    %cst_20 = arith.constant dense<0.000000e+00> : vector<4x8x8xf32>
    %85 = tpu.matmul %82, %83, %cst_20 {dimension_numbers = #tpu.dot_dimension_numbers<[2], [2], [1], [1], [0, 0, 0, 1, 1, 1], [0], [0]>} : vector<4x8x8xbf16>, vector<4x8x8xbf16>, vector<4x8x8xf32> -> vector<4x8x8xf32>
    "tpu.trace_stop"() : () -> ()
    %cst_21 = arith.constant dense<0xFF800000> : vector<4x8xf32>
    %86 = vector.multi_reduction <maximumf>, %85, %cst_21 [2] : vector<4x8x8xf32> to vector<4x8xf32>
    %87 = vector.shape_cast %86 : vector<4x8xf32> to vector<4x8x1xf32>
    %88 = vector.broadcast %87 : vector<4x8x1xf32> to vector<4x8x8xf32>
    %89 = arith.subf %85, %88 : vector<4x8x8xf32>
    %90 = math.exp %89 : vector<4x8x8xf32>
    %cst_22 = arith.constant dense<0.000000e+00> : vector<4x8xf32>
    %91 = vector.multi_reduction <add>, %90, %cst_22 [2] : vector<4x8x8xf32> to vector<4x8xf32>
    %92 = vector.shape_cast %91 : vector<4x8xf32> to vector<4x8x1xf32>
    %93 = tpu.reciprocal %92 {approx = true} : vector<4x8x1xf32> -> vector<4x8x1xf32>
    %94 = vector.broadcast %93 : vector<4x8x1xf32> to vector<4x8x8xf32>
    %95 = arith.mulf %90, %94 : vector<4x8x8xf32>
    %96 = arith.truncf %95 : vector<4x8x8xf32> to vector<4x8x8xbf16>
    "tpu.trace_start"() <{level = 10 : i32, message = "hqk,hkd->hqd"}> : () -> ()
    %cst_23 = arith.constant dense<0.000000e+00> : vector<4x8x8xf32>
    %97 = tpu.matmul %96, %84, %cst_23 {dimension_numbers = #tpu.dot_dimension_numbers<[2], [1], [1], [2], [0, 0, 0, 1, 1, 2], [0], [0]>} : vector<4x8x8xbf16>, vector<4x8x8xbf16>, vector<4x8x8xf32> -> vector<4x8x8xf32>
    "tpu.trace_stop"() : () -> ()
    %98 = arith.truncf %97 : vector<4x8x8xf32> to vector<4x8x8xbf16>
    %c0_24 = arith.constant 0 : index
    %c0_25 = arith.constant 0 : index
    %c0_26 = arith.constant 0 : index
    %99 = vector.load %arg4[%c0_24, %c0_25, %c0_26] : memref<4x8x32xbf16, #tpu.memory_space<vmem>>, vector<4x8x32xbf16>
    "tpu.trace_start"() <{level = 10 : i32, message = "hsd,hdm->hsm"}> : () -> ()
    %cst_27 = arith.constant dense<0.000000e+00> : vector<4x8x32xf32>
    %100 = tpu.matmul %98, %99, %cst_27 {dimension_numbers = #tpu.dot_dimension_numbers<[2], [1], [1], [2], [0, 0, 0, 1, 1, 2], [0], [0]>} : vector<4x8x8xbf16>, vector<4x8x32xbf16>, vector<4x8x32xf32> -> vector<4x8x32xf32>
    "tpu.trace_stop"() : () -> ()
    %cst_28 = arith.constant dense<0.000000e+00> : vector<8x32xf32>
    %101 = vector.multi_reduction <add>, %100, %cst_28 [0] : vector<4x8x32xf32> to vector<8x32xf32>
    %c0_29 = arith.constant 0 : index
    %c0_30 = arith.constant 0 : index
    %102 = vector.load %arg5[%c0_29, %c0_30] : memref<1x32xf32, #tpu.memory_space<vmem>>, vector<1x32xf32>
    %103 = vector.broadcast %102 : vector<1x32xf32> to vector<8x32xf32>
    %104 = arith.addf %101, %103 : vector<8x32xf32>
    %105 = arith.addf %1, %104 : vector<8x32xf32>
    %c0_31 = arith.constant 0 : index
    %c0_32 = arith.constant 0 : index
    %106 = vector.load %arg12[%c0_31, %c0_32] : memref<1x32xf32, #tpu.memory_space<vmem>>, vector<1x32xf32>
    %c0_33 = arith.constant 0 : index
    %c0_34 = arith.constant 0 : index
    %107 = vector.load %arg13[%c0_33, %c0_34] : memref<1x32xf32, #tpu.memory_space<vmem>>, vector<1x32xf32>
    %cst_35 = arith.constant dense<0.000000e+00> : vector<8xf32>
    %108 = vector.multi_reduction <add>, %105, %cst_35 [1] : vector<8x32xf32> to vector<8xf32>
    %109 = vector.shape_cast %108 : vector<8xf32> to vector<8x1xf32>
    %cst_36 = arith.constant 3.200000e+01 : f32
    %110 = vector.broadcast %cst_36 : f32 to vector<8x1xf32>
    %111 = arith.divf %109, %110 : vector<8x1xf32>
    %112 = vector.broadcast %111 : vector<8x1xf32> to vector<8x32xf32>
    %113 = arith.subf %105, %112 : vector<8x32xf32>
    %114 = arith.mulf %113, %113 : vector<8x32xf32>
    %cst_37 = arith.constant dense<0.000000e+00> : vector<8xf32>
    %115 = vector.multi_reduction <add>, %114, %cst_37 [1] : vector<8x32xf32> to vector<8xf32>
    %116 = vector.shape_cast %115 : vector<8xf32> to vector<8x1xf32>
    %cst_38 = arith.constant 3.200000e+01 : f32
    %117 = vector.broadcast %cst_38 : f32 to vector<8x1xf32>
    %118 = arith.divf %116, %117 : vector<8x1xf32>
    %cst_39 = arith.constant 9.99999997E-7 : f32
    %119 = vector.broadcast %cst_39 : f32 to vector<8x1xf32>
    %120 = arith.addf %118, %119 : vector<8x1xf32>
    %121 = math.rsqrt %120 : vector<8x1xf32>
    %122 = vector.broadcast %121 : vector<8x1xf32> to vector<8x32xf32>
    %123 = arith.mulf %113, %122 : vector<8x32xf32>
    %124 = vector.broadcast %106 : vector<1x32xf32> to vector<8x32xf32>
    %125 = arith.mulf %123, %124 : vector<8x32xf32>
    %126 = vector.broadcast %107 : vector<1x32xf32> to vector<8x32xf32>
    %127 = arith.addf %125, %126 : vector<8x32xf32>
    %128 = arith.truncf %127 : vector<8x32xf32> to vector<8x32xbf16>
    %c0_40 = arith.constant 0 : index
    %c0_41 = arith.constant 0 : index
    %129 = vector.load %arg8[%c0_40, %c0_41] : memref<32x64xbf16, #tpu.memory_space<vmem>>, vector<32x64xbf16>
    %cst_42 = arith.constant dense<0.000000e+00> : vector<8x64xf32>
    %130 = tpu.matmul %128, %129, %cst_42 {dimension_numbers = #tpu.dot_dimension_numbers<[1], [0], [0], [1], [0, 0, 1, 1], [], []>} : vector<8x32xbf16>, vector<32x64xbf16>, vector<8x64xf32> -> vector<8x64xf32>
    %c0_43 = arith.constant 0 : index
    %c0_44 = arith.constant 0 : index
    %131 = vector.load %arg9[%c0_43, %c0_44] : memref<1x64xf32, #tpu.memory_space<vmem>>, vector<1x64xf32>
    %132 = vector.broadcast %131 : vector<1x64xf32> to vector<8x64xf32>
    %133 = arith.addf %130, %132 : vector<8x64xf32>
    %cst_45 = arith.constant 0.000000e+00 : f32
    %134 = vector.broadcast %cst_45 : f32 to vector<8x64xf32>
    %135 = arith.maximumf %133, %134 : vector<8x64xf32>
    %136 = arith.truncf %135 : vector<8x64xf32> to vector<8x64xbf16>
    %c0_46 = arith.constant 0 : index
    %c0_47 = arith.constant 0 : index
    %137 = vector.load %arg10[%c0_46, %c0_47] : memref<64x32xbf16, #tpu.memory_space<vmem>>, vector<64x32xbf16>
    %cst_48 = arith.constant dense<0.000000e+00> : vector<8x32xf32>
    %138 = tpu.matmul %136, %137, %cst_48 {dimension_numbers = #tpu.dot_dimension_numbers<[1], [0], [0], [1], [0, 0, 1, 1], [], []>} : vector<8x64xbf16>, vector<64x32xbf16>, vector<8x32xf32> -> vector<8x32xf32>
    %c0_49 = arith.constant 0 : index
    %c0_50 = arith.constant 0 : index
    %139 = vector.load %arg11[%c0_49, %c0_50] : memref<1x32xf32, #tpu.memory_space<vmem>>, vector<1x32xf32>
    %140 = vector.broadcast %139 : vector<1x32xf32> to vector<8x32xf32>
    %141 = arith.addf %138, %140 : vector<8x32xf32>
    %142 = arith.addf %105, %141 : vector<8x32xf32>
    %c0_51 = arith.constant 0 : index
    %c0_52 = arith.constant 0 : index
    %c0_53 = arith.constant 0 : index
    %143 = vector.load %arg16[%c0_51, %c0_52, %c0_53] : memref<1x8x32xf32, #tpu.memory_space<vmem>>, vector<1x8x32xf32>
    %144 = vector.shape_cast %143 : vector<1x8x32xf32> to vector<8x32xf32>
    %145 = vector.shape_cast %142 : vector<8x32xf32> to vector<1x8x32xf32>
    tpu.vector_store %arg16[%c0_51, %c0_52, %c0_53], %145 {strides = array<i32>} : memref<1x8x32xf32, #tpu.memory_space<vmem>>, vector<1x8x32xf32>,
    return
  }
  func.func @transform_0(%arg0: i32) -> (i32, i32, i32) {
    %c0_i32 = arith.constant 0 : i32
    %c0_i32_0 = arith.constant 0 : i32
    %c0_i32_1 = arith.constant 0 : i32
    return %arg0, %c0_i32, %c0_i32_0 : i32, i32, i32
  }
  func.func @transform_1(%arg0: i32) -> (i32, i32) {
    %c0_i32 = arith.constant 0 : i32
    %c0_i32_0 = arith.constant 0 : i32
    %c0_i32_1 = arith.constant 0 : i32
    return %c0_i32, %c0_i32_0 : i32, i32
  }
  func.func @transform_2(%arg0: i32) -> (i32, i32) {
    %c0_i32 = arith.constant 0 : i32
    %c0_i32_0 = arith.constant 0 : i32
    %c0_i32_1 = arith.constant 0 : i32
    return %c0_i32, %c0_i32_0 : i32, i32
  }
  func.func @transform_3(%arg0: i32) -> (i32, i32, i32) {
    %c0_i32 = arith.constant 0 : i32
    %c0_i32_0 = arith.constant 0 : i32
    %c0_i32_1 = arith.constant 0 : i32
    %c0_i32_2 = arith.constant 0 : i32
    return %c0_i32, %c0_i32_0, %c0_i32_1 : i32, i32, i32
  }
  func.func @transform_4(%arg0: i32) -> (i32, i32) {
    %c0_i32 = arith.constant 0 : i32
    %c0_i32_0 = arith.constant 0 : i32
    %c0_i32_1 = arith.constant 0 : i32
    return %c0_i32, %c0_i32_0 : i32, i32
  }
  func.func @transform_5(%arg0: i32) -> (i32, i32) {
    %c0_i32 = arith.constant 0 : i32
    %c0_i32_0 = arith.constant 0 : i32
    %c0_i32_1 = arith.constant 0 : i32
    return %c0_i32, %c0_i32_0 : i32, i32
  }
  func.func @transform_6(%arg0: i32) -> (i32, i32) {
    %c0_i32 = arith.constant 0 : i32
    %c0_i32_0 = arith.constant 0 : i32
    %c0_i32_1 = arith.constant 0 : i32
    return %c0_i32, %c0_i32_0 : i32, i32
  }
  func.func @transform_7(%arg0: i32) -> (i32, i32) {
    %c0_i32 = arith.constant 0 : i32
    %c0_i32_0 = arith.constant 0 : i32
    %c0_i32_1 = arith.constant 0 : i32
    return %c0_i32, %c0_i32_0 : i32, i32
  }
  func.func @transform_8(%arg0: i32) -> (i32, i32) {
    %c0_i32 = arith.constant 0 : i32
    %c0_i32_0 = arith.constant 0 : i32
    %c0_i32_1 = arith.constant 0 : i32
    return %c0_i32, %c0_i32_0 : i32, i32
  }
  func.func @transform_9(%arg0: i32) -> (i32, i32) {
    %c0_i32 = arith.constant 0 : i32
    %c0_i32_0 = arith.constant 0 : i32
    %c0_i32_1 = arith.constant 0 : i32
    return %c0_i32, %c0_i32_0 : i32, i32
  }
  func.func @transform_10(%arg0: i32) -> (i32, i32) {
    %c0_i32 = arith.constant 0 : i32
    %c0_i32_0 = arith.constant 0 : i32
    %c0_i32_1 = arith.constant 0 : i32
    return %c0_i32, %c0_i32_0 : i32, i32
  }
  func.func @transform_11(%arg0: i32) -> (i32, i32) {
    %c0_i32 = arith.constant 0 : i32
    %c0_i32_0 = arith.constant 0 : i32
    %c0_i32_1 = arith.constant 0 : i32
    return %c0_i32, %c0_i32_0 : i32, i32
  }
  func.func @transform_12(%arg0: i32) -> (i32, i32) {
    %c0_i32 = arith.constant 0 : i32
    %c0_i32_0 = arith.constant 0 : i32
    %c0_i32_1 = arith.constant 0 : i32
    return %c0_i32, %c0_i32_0 : i32, i32
  }
  func.func @transform_13(%arg0: i32) -> (i32, i32) {
    %c0_i32 = arith.constant 0 : i32
    %c0_i32_0 = arith.constant 0 : i32
    %c0_i32_1 = arith.constant 0 : i32
    return %c0_i32, %c0_i32_0 : i32, i32
  }
  func.func @transform_14(%arg0: i32) -> (i32, i32) {
    %c0_i32 = arith.constant 0 : i32
    %c0_i32_0 = arith.constant 0 : i32
    %c0_i32_1 = arith.constant 0 : i32
    return %c0_i32, %c0_i32_0 : i32, i32
  }
  func.func @transform_15(%arg0: i32) -> (i32, i32, i32) {
    %c0_i32 = arith.constant 0 : i32
    %c0_i32_0 = arith.constant 0 : i32
    %c0_i32_1 = arith.constant 0 : i32
    return %arg0, %c0_i32, %c0_i32_0 : i32, i32, i32
  }
}

</mosaic_0001>

<llo_original>
// kernel: transformer_forward.5
$region0: #{transformer_forward.5}
  #allocation0 [shape = 'u32[]', space=smem, size = 0x4, offset = 0x4, fixed_abs, tag = 'smem constant byte address 0x4 - core index']
  #allocation1 [shape = 'u32[144,128]{1,0:T(1,128)}', space=vmem, size = 0x12000, scoped, tag = 'internal scratch']
  %s0 = inlined_call_operand.vmem [shape: f32[2,8,32], index: 0, kind: input, shape index: {}]
  %s1 = inlined_call_operand.vmem [shape: f32[1,32], index: 1, kind: input, shape index: {}]
  %s2 = inlined_call_operand.vmem [shape: f32[1,32], index: 2, kind: input, shape index: {}]
  %s3 = inlined_call_operand.vmem [shape: bf16[32,128], index: 3, kind: input, shape index: {}]
  %s4 = inlined_call_operand.vmem [shape: f32[1,128], index: 4, kind: input, shape index: {}]
  %s5 = inlined_call_operand.hbm [shape: f32[2,8,128], index: 5, kind: output, shape index: {}]
  %s6 = sld [smem:[#allocation0]]
  $region53: #{transformer_forward.5} parent=0
    _
  %s8 = ssub.s32 1, %s6
  %s9 = scalar_select 0, %s8, %s6
  $region1: #{transformer_forward.5} parent=0
    #allocation2 [shape = 'u8[8192]{0}', space=vmem, size = 0x2000, scoped, tag = 'output window, operand 0']
    #allocation3 [shape = 's32[2]{0}', space=sflag, size = 0x8, scoped, tag = 'scoped memory for transformer_forward.5']
    %10 = vsyncpa [#allocation3], 0
    %s11 = scalar_lea.sflag [#allocation3], 1
    %12 = vsyncpa %s11, 0
    loop: start=0, step=1, limit=4
    $region2: #{transformer_forward.5} parent=1 // loop_pre_header
      _
    $region3: #{transformer_forward.5} parent=1 // loop_header
      %s14 = sphi 0, %s18
      %p15 = scmp.ge.s32.totalorder %s14, 4
      %s21 = sphi 0, %s33
      %s22 = sphi 0, %s29
      %s23 = sphi 0, %s21
      %s24 = sphi 0, %s22
      %s25 = sphi 0, %s23
      %s26 = sphi 0, %s24
      %s38 = sphi 0, %s40
      %s41 = sphi 0, %s38
      %s42 = sphi 0, %s41
      %s58 = sphi 0, %s42
      %s62 = sphi 0, %s62
      %s64 = sphi 0, %s62
      %s65 = sphi 0, %s64
      %s79 = sphi 0, %s65
      %s83 = sphi 0, %s83
      %s85 = sphi 0, %s83
      %s86 = sphi 0, %s85
      %s100 = sphi 0, %s86
      %s104 = sphi 0, %s104
      %s106 = sphi 0, %s104
      %s107 = sphi 0, %s106
      %s121 = sphi 0, %s107
      %s125 = sphi 0, %s125
      %s127 = sphi 0, %s125
      %s128 = sphi 0, %s127
      %s142 = sphi 0, %s128
      %s150 = sphi 0, %s152
      %s153 = sphi 0, %s150
      %s154 = sphi 0, %s153
      %s170 = sphi 0, %s154
    $region4: #{transformer_forward.5} parent=1 // loop_header_branch
      %17 = sbr.rel (%p15) target = $region8
    $region5: #{transformer_forward.5} parent=1 // loop_body
      %s19 = ssub.s32 %s14, 1
      %s20 = ssub.s32 %s14, 2
      %s27 = sadd.s32 1, %s22
      %p28 = scmp.ge.s32.totalorder %s27, 1
      %s29 = scalar_select %p28, 0, %s27
      %s30 = sadd.s32 1, %s21
      %s31 = scalar_select %p28, %s30, %s21
      %p32 = scmp.ge.s32.totalorder %s31, 2
      %s33 = scalar_select %p32, 0, %s31
      %s34 = ssub.s32 %s21, %s33
      %s35 = ssub.s32 %s22, %s29
      %s36 = sor.u32 %s34, %s35
      %p37 = scmp.eq.s32.totalorder %s36, 0
      %s39 = sadd.s32 %s38, 1
      %s40 = scalar_select %p37, %s38, %s39
      %p43 = pneg %p37
      %p44 = scmp.eq.s32.totalorder %s14, 1
      %p45 = por %p43, %p44
      %p46 = scmp.ne.s32.totalorder %s38, %s41
      %p47 = scmp.eq.s32.totalorder %s14, 0
      %p48 = por %p46, %p47
      %p49 = scmp.ne.s32.totalorder %s38, %s41
      %p50 = scmp.eq.s32.totalorder %s19, 1
      %p51 = por %p49, %p50
      %p52 = scmp.ne.s32.totalorder %s41, %s42
      %p53 = scmp.eq.s32.totalorder %s19, 0
      %p54 = por %p52, %p53
      %p55 = scmp.ne.s32.totalorder %s41, %s42
      %p56 = scmp.eq.s32.totalorder %s20, 1
      %p57 = por %p55, %p56
      %p59 = scmp.ne.s32.totalorder %s42, %s58
      %p60 = scmp.eq.s32.totalorder %s20, 0
      %p61 = por %p59, %p60
      %s63 = sadd.s32 %s62, 1
      %p66 = scmp.eq.s32.totalorder %s14, 1
      %p67 = scmp.ne.s32.totalorder %s62, %s64
      %p68 = scmp.eq.s32.totalorder %s14, 0
      %p69 = por %p67, %p68
      %p70 = scmp.ne.s32.totalorder %s62, %s64
      %p71 = scmp.eq.s32.totalorder %s19, 1
      %p72 = por %p70, %p71
      %p73 = scmp.ne.s32.totalorder %s64, %s65
      %p74 = scmp.eq.s32.totalorder %s19, 0
      %p75 = por %p73, %p74
      %p76 = scmp.ne.s32.totalorder %s64, %s65
      %p77 = scmp.eq.s32.totalorder %s20, 1
      %p78 = por %p76, %p77
      %p80 = scmp.ne.s32.totalorder %s65, %s79
      %p81 = scmp.eq.s32.totalorder %s20, 0
      %p82 = por %p80, %p81
      %s84 = sadd.s32 %s83, 1
      %p87 = scmp.eq.s32.totalorder %s14, 1
      %p88 = scmp.ne.s32.totalorder %s83, %s85
      %p89 = scmp.eq.s32.totalorder %s14, 0
      %p90 = por %p88, %p89
      %p91 = scmp.ne.s32.totalorder %s83, %s85
      %p92 = scmp.eq.s32.totalorder %s19, 1
      %p93 = por %p91, %p92
      %p94 = scmp.ne.s32.totalorder %s85, %s86
      %p95 = scmp.eq.s32.totalorder %s19, 0
      %p96 = por %p94, %p95
      %p97 = scmp.ne.s32.totalorder %s85, %s86
      %p98 = scmp.eq.s32.totalorder %s20, 1
      %p99 = por %p97, %p98
      %p101 = scmp.ne.s32.totalorder %s86, %s100
      %p102 = scmp.eq.s32.totalorder %s20, 0
      %p103 = por %p101, %p102
      %s105 = sadd.s32 %s104, 1
      %p108 = scmp.eq.s32.totalorder %s14, 1
      %p109 = scmp.ne.s32.totalorder %s104, %s106
      %p110 = scmp.eq.s32.totalorder %s14, 0
      %p111 = por %p109, %p110
      %p112 = scmp.ne.s32.totalorder %s104, %s106
      %p113 = scmp.eq.s32.totalorder %s19, 1
      %p114 = por %p112, %p113
      %p115 = scmp.ne.s32.totalorder %s106, %s107
      %p116 = scmp.eq.s32.totalorder %s19, 0
      %p117 = por %p115, %p116
      %p118 = scmp.ne.s32.totalorder %s106, %s107
      %p119 = scmp.eq.s32.totalorder %s20, 1
      %p120 = por %p118, %p119
      %p122 = scmp.ne.s32.totalorder %s107, %s121
      %p123 = scmp.eq.s32.totalorder %s20, 0
      %p124 = por %p122, %p123
      %s126 = sadd.s32 %s125, 1
      %p129 = scmp.eq.s32.totalorder %s14, 1
      %p130 = scmp.ne.s32.totalorder %s125, %s127
      %p131 = scmp.eq.s32.totalorder %s14, 0
      %p132 = por %p130, %p131
      %p133 = scmp.ne.s32.totalorder %s125, %s127
      %p134 = scmp.eq.s32.totalorder %s19, 1
      %p135 = por %p133, %p134
      %p136 = scmp.ne.s32.totalorder %s127, %s128
      %p137 = scmp.eq.s32.totalorder %s19, 0
      %p138 = por %p136, %p137
      %p139 = scmp.ne.s32.totalorder %s127, %s128
      %p140 = scmp.eq.s32.totalorder %s20, 1
      %p141 = por %p139, %p140
      %p143 = scmp.ne.s32.totalorder %s128, %s142
      %p144 = scmp.eq.s32.totalorder %s20, 0
      %p145 = por %p143, %p144
      %s146 = ssub.s32 %s21, %s33
      %s147 = ssub.s32 %s22, %s29
      %s148 = sor.u32 %s146, %s147
      %p149 = scmp.eq.s32.totalorder %s148, 0
      %s151 = sadd.s32 %s150, 1
      %s152 = scalar_select %p149, %s150, %s151
      %p155 = pneg %p149
      %p156 = scmp.eq.s32.totalorder %s14, 1
      %p157 = por %p155, %p156
      %p158 = scmp.ne.s32.totalorder %s150, %s153
      %p159 = scmp.eq.s32.totalorder %s14, 0
      %p160 = por %p158, %p159
      %p161 = scmp.ne.s32.totalorder %s150, %s153
      %p162 = scmp.eq.s32.totalorder %s19, 1
      %p163 = por %p161, %p162
      %p164 = scmp.ne.s32.totalorder %s153, %s154
      %p165 = scmp.eq.s32.totalorder %s19, 0
      %p166 = por %p164, %p165
      %p167 = scmp.ne.s32.totalorder %s153, %s154
      %p168 = scmp.eq.s32.totalorder %s20, 1
      %p169 = por %p167, %p168
      %p171 = scmp.ne.s32.totalorder %s154, %s170
      %p172 = scmp.eq.s32.totalorder %s20, 0
      %p173 = por %p171, %p172
      %p174 = scmp.le.s32.totalorder 1, %s14
      %p175 = scmp.lt.s32.totalorder %s14, 3
      %p176 = pnand %p174, %p175
      %p177 = pneg %p176
      // Predicated region
      $region9: #{transformer_forward.5} parent=5 // pred_check
        _
      $region10: #{transformer_forward.5} parent=5 // pred_check_branch
        %179 = sbr.rel (%p176) target = $region12
      $region11: #{transformer_forward.5} parent=5 // pred_region
        %s180 = ssub.s32 %s14, 1
        // Predicated region
        $region13: #{transformer_forward.5} parent=11 // pred_check
          %p181 = pneg %p75
        $region14: #{transformer_forward.5} parent=11 // pred_check_branch
          %183 = sbr.rel (%p181) target = $region16
        $region15: #{transformer_forward.5} parent=11 // pred_region
          _
        $region16: #{transformer_forward.5} parent=11 // pred_fallthru
          _
        // Predicated region
        $region17: #{transformer_forward.5} parent=11 // pred_check
          %p184 = pneg %p96
        $region18: #{transformer_forward.5} parent=11 // pred_check_branch
          %186 = sbr.rel (%p184) target = $region20
        $region19: #{transformer_forward.5} parent=11 // pred_region
          _
        $region20: #{transformer_forward.5} parent=11 // pred_fallthru
          _
        // Predicated region
        $region21: #{transformer_forward.5} parent=11 // pred_check
          %p187 = pneg %p117
        $region22: #{transformer_forward.5} parent=11 // pred_check_branch
          %189 = sbr.rel (%p187) target = $region24
        $region23: #{transformer_forward.5} parent=11 // pred_region
          _
        $region24: #{transformer_forward.5} parent=11 // pred_fallthru
          _
        // Predicated region
        $region25: #{transformer_forward.5} parent=11 // pred_check
          %p190 = pneg %p138
        $region26: #{transformer_forward.5} parent=11 // pred_check_branch
          %192 = sbr.rel (%p190) target = $region28
        $region27: #{transformer_forward.5} parent=11 // pred_region
          _
        $region28: #{transformer_forward.5} parent=11 // pred_fallthru
          _
      $region12: #{transformer_forward.5} parent=5 // pred_fallthru
        _
      %p193 = scmp.lt.s32.totalorder %s14, 2
      // Predicated region
      $region29: #{transformer_forward.5} parent=5 // pred_check
        %p194 = pneg %p193
      $region30: #{transformer_forward.5} parent=5 // pred_check_branch
        %196 = sbr.rel (%p194) target = $region32
      $region31: #{transformer_forward.5} parent=5 // pred_region
        // Predicated region
        $region33: #{transformer_forward.5} parent=31 // pred_check
          %p197 = pneg %p48
        $region34: #{transformer_forward.5} parent=31 // pred_check_branch
          %199 = sbr.rel (%p197) target = $region36
        $region35: #{transformer_forward.5} parent=31 // pred_region
          %p200 = scmp.lt.s32.totalorder %s21, 1
          %s201 = scalar_select %p200, %s21, 1
          %p202 = scmp.lt.s32.totalorder %s22, 0
          %s203 = scalar_select %p202, %s22, 0
          %s204 = sadd.s32 %s203, %s201
          %s205 = smul.addr %s204, 8
          %s206 = scalar_lea.vmem %s0, %s205
        $region36: #{transformer_forward.5} parent=31 // pred_fallthru
          _
      $region32: #{transformer_forward.5} parent=5 // pred_fallthru
        _
      %p207 = scmp.le.s32.totalorder 1, %s14
      %p208 = scmp.lt.s32.totalorder %s14, 3
      %p209 = pnand %p207, %p208
      %p210 = pneg %p209
      // Predicated region
      $region37: #{transformer_forward.5} parent=5 // pred_check
        _
      $region38: #{transformer_forward.5} parent=5 // pred_check_branch
        %212 = sbr.rel (%p209) target = $region40
      $region39: #{transformer_forward.5} parent=5 // pred_region
        %s213 = ssub.s32 %s14, 1
        %p214 = scmp.lt.s32.totalorder %s23, 1
        %s215 = scalar_select %p214, %s23, 1
        %p216 = scmp.lt.s32.totalorder %s24, 0
        %s217 = scalar_select %p216, %s24, 0
        %s218 = sadd.s32 %s217, %s215
        %s219 = smul.addr %s218, 8
        %s220 = scalar_lea.vmem %s0, %s219
        %p221 = pneg %p54
        %p222 = pneg %p51
        %p223 = pneg %p75
        %p224 = pneg %p72
        %p225 = pneg %p96
        %p226 = pneg %p93
        %p227 = pneg %p117
        %p228 = pneg %p114
        %p229 = pneg %p138
        %p230 = pneg %p135
        %p231 = pneg %p166
        %p232 = pneg %p163
        %s233 = sand.u32 %s153, 1
        %s234 = scalar_lea.sflag [#allocation3], %s233
        %s235 = sand.u32 %s153, 1
        %s236 = smul.addr %s235, 8
        %s237 = scalar_lea.vmem [#allocation2], %s236
        %p238 = scmp.lt.s32.totalorder %s23, 1
        %s239 = scalar_select %p238, %s23, 1
        %p240 = scmp.lt.s32.totalorder %s24, 0
        %s241 = scalar_select %p240, %s24, 0
        %s242 = sadd.s32 %s241, %s239
        %s243 = smul.addr %s242, 8
        %s244 = scalar_lea.vmem %s0, %s243
        %v246 = vld [vmem:[%s244] sm:$0xff]
        %v247 = vld [vmem:[%s1] sm:$0x1]
        %v248 = vld [vmem:[%s2] sm:$0x1]
        %vm249 = vcmask 261120
        %v250 = vsel %vm249, %v246, 0.0
        %251 = vadd.xlane.f32.xlu0 %v250
        %v252 = vpop.xlane.xlu0 %251
        %v253 = vrcp.pop 32.0
        %v254 = vmul.f32 %v252, %v253
        %v255 = vsub.f32 %v246, %v254
        %v256 = vmul.f32 %v255, %v255
        %v257 = vsel %vm249, %v256, 0.0
        %258 = vadd.xlane.f32.xlu0 %v257
        %v259 = vpop.xlane.xlu0 %258
        %v260 = vmul.f32 %v259, %v253
        %v261 = vadd.f32 %v260, 1e-06
        %v262 = vrsqrt.pop %v261
        %v263 = vmul.f32 %v255, %v262
        %v265 = vlaneseq
        %v266 = vshrl.u32 %v265, 7
        %v267 = vsub.s32 0, %v266
        %v268 = vrot.slane %v247, %v267
        %v270 = vmul.f32 %v263, %v268
        %v272 = vlaneseq
        %v273 = vshrl.u32 %v272, 7
        %v274 = vsub.s32 0, %v273
        %v275 = vrot.slane %v248, %v274
        %v277 = vadd.f32 %v270, %v275
        %v278 = vpack.c.bf16 %v277, %v277
        %v279 = vld [vmem:[%s3] sm:$0xf]
        %v280 = vld [vmem:[%s3 + $0x4] sm:$0xf]
        %v281 = vld [vmem:[%s3 + $0x8] sm:$0xf]
        %v282 = vld [vmem:[%s3 + $0xc] sm:$0xf]
        %v283 = vld [vmem:[%s4] sm:$0x1]
        %v285 = vlaneseq
        %v286 = vshrl.u32 %v285, 7
        %v287 = vsub.s32 0, %v286
        %v288 = vrot.slane %v283, %v287
        %v294 = vunpack.c.l.b16 %v279
        %v295 = vunpack.c.l.b16 %v280
        %v296 = vunpack.c.l.b16 %v281
        %v297 = vunpack.c.l.b16 %v282
        %v298 = vpack.c.b16 %v295, %v294
        %v299 = vpack.c.b16 %v297, %v296
        %v303 = vsel %vm249, %v278, 0
        %305 = vmatprep.subr.bf16.mxu0 0
        %306 = vmatpush1.bf16.msra.mxu0 %v298
        %307 = vmatprep.subr.bf16.mxu0 0
        %308 = vmatpush1.bf16.msra.mxu0 %v299
        %309 = vmatprep.subr.bf16.mxu0 0
        %310 = vmatpush1.bf16.msra.mxu0 0
        %311 = vmatprep.subr.bf16.mxu0 0
        %312 = vmatpush1.bf16.msra.mxu0 0
        %313 = vmatprep.subr.bf16.mxu0 0
        %314 = vmatpush1.bf16.msra.mxu0 0
        %315 = vmatprep.subr.bf16.mxu0 0
        %316 = vmatpush1.bf16.msra.mxu0 0
        %317 = vmatprep.subr.bf16.mxu0 0
        %318 = vmatpush1.bf16.msra.mxu0 0
        %319 = vmatprep.subr.bf16.mxu0 0
        %320 = vmatpush1.bf16.msra.mxu0 0
        %321 = vmatprep.subr.bf16.mxu0 0
        %322 = vmatpush1.bf16.msra.mxu0 0
        %323 = vmatprep.subr.bf16.mxu0 0
        %324 = vmatpush1.bf16.msra.mxu0 0
        %325 = vmatprep.subr.bf16.mxu0 0
        %326 = vmatpush1.bf16.msra.mxu0 0
        %327 = vmatprep.subr.bf16.mxu0 0
        %328 = vmatpush1.bf16.msra.mxu0 0
        %329 = vmatprep.subr.bf16.mxu0 0
        %330 = vmatpush1.bf16.msra.mxu0 0
        %331 = vmatprep.subr.bf16.mxu0 0
        %332 = vmatpush1.bf16.msra.mxu0 0
        %333 = vmatprep.subr.bf16.mxu0 0
        %334 = vmatpush1.bf16.msra.mxu0 0
        %335 = vmatprep.subr.bf16.mxu0 0
        %336 = vmatpush1.bf16.msra.mxu0 0
        %337 = vmatprep.mubr.bf16.mxu0 0
        %338 = vmatmul.mubr.bf16.gmra.mrb[0].mxu0 %v303
        %v339 = vpop.f32.mrb[0].mxu0
        %v340 = vadd.f32 %v288, %v339
        %v341 = vpop.f32.mrb[0].mxu0
        %v342 = vpop.f32.mrb[0].mxu0
        %v343 = vpop.f32.mrb[0].mxu0
        %344 = vdwg.mxu0
        %345 = vmax.xlane.f32.xlu0 %v340
        %v346 = vpop.xlane.xlu0 %345
        %v347 = vsub.f32 %v340, %v346
        %v348 = vmul.f32 %v347, 1.442695
        %v349 = vpow.pop %v348
        %350 = vadd.xlane.f32.xlu0 %v349
        %v351 = vpop.xlane.xlu0 %350
        %v352 = vlog2.pop %v351
        %v353 = vmul.f32 %v352, 0.6931472
        %v354 = vsub.f32 %v347, %v353
        %355 = vst [vmem:[%s237] sm:$0xff] %v354
        %s356 = sand.u32 %s153, 1
        %s357 = scalar_lea.sflag [#allocation3], %s356
        %s358 = sand.u32 %s153, 1
        %s359 = smul.addr %s358, 8
        %s360 = scalar_lea.vmem [#allocation2], %s359
        // Predicated region
        $region41: #{transformer_forward.5} parent=39 // pred_check
          %p361 = pneg %p163
        $region42: #{transformer_forward.5} parent=39 // pred_check_branch
          %363 = sbr.rel (%p361) target = $region44
        $region43: #{transformer_forward.5} parent=39 // pred_region
          %s365 = ssub.s32 128, 128
          %366 = vsyncadd %s357, %s365
          %s367 = sadd.s32 %s24, %s23
          %s368 = smul.addr %s367, 128
          %s369 = scalar_lea.hbm %s5, %s368
          %s371 = sshll.u32 %s360, 4
          %s372 = int_to_ptr.vmem [resolvable:$true] %s371
          %374 = dma.vmem_to_hbm [thread:$0]  %s372, 128, %s369, %s357
        $region44: #{transformer_forward.5} parent=39 // pred_fallthru
          _
      $region40: #{transformer_forward.5} parent=5 // pred_fallthru
        _
      %p375 = scmp.le.s32.totalorder 2, %s14
      // Predicated region
      $region45: #{transformer_forward.5} parent=5 // pred_check
        %p376 = pneg %p375
      $region46: #{transformer_forward.5} parent=5 // pred_check_branch
        %378 = sbr.rel (%p376) target = $region48
      $region47: #{transformer_forward.5} parent=5 // pred_region
        %s379 = ssub.s32 %s14, 2
        // Predicated region
        $region49: #{transformer_forward.5} parent=47 // pred_check
          %p380 = pneg %p169
        $region50: #{transformer_forward.5} parent=47 // pred_check_branch
          %382 = sbr.rel (%p380) target = $region52
        $region51: #{transformer_forward.5} parent=47 // pred_region
          %s383 = sand.u32 %s154, 1
          %s384 = scalar_lea.sflag [#allocation3], %s383
          %s385 = sand.u32 %s154, 1
          %s386 = smul.addr %s385, 8
          %s387 = scalar_lea.vmem [#allocation2], %s386
          %388 = dma.done %s384, 128
        $region52: #{transformer_forward.5} parent=47 // pred_fallthru
          _
      $region48: #{transformer_forward.5} parent=5 // pred_fallthru
        _
    $region6: #{transformer_forward.5} parent=1 // loop_footer
      %s18 = sadd.s32 1, %s14
    $region7: #{transformer_forward.5} parent=1 // loop_footer_branch
      %13 = sbr.rel target = $region3
    $region8: #{transformer_forward.5} parent=1 // loop_exit
      _
    %389 = vsyncpa [#allocation3], 1
    %s390 = scalar_lea.sflag [#allocation3], 1
    %391 = vsyncpa %s390, 1

// kernel: transformer_forward.3
$region0: #{transformer_forward.3}
  #allocation0 [shape = 'u32[]', space=smem, size = 0x4, offset = 0x4, fixed_abs, tag = 'smem constant byte address 0x4 - core index']
  #allocation1 [shape = 'u32[144,128]{1,0:T(1,128)}', space=vmem, size = 0x12000, scoped, tag = 'internal scratch']
  %s0 = inlined_call_operand.vmem [shape: f32[2,8,32], index: 0, kind: input, shape index: {}]
  %s1 = inlined_call_operand.vmem [shape: bf16[32,96], index: 1, kind: input, shape index: {}]
  %s2 = inlined_call_operand.vmem [shape: f32[1,96], index: 2, kind: input, shape index: {}]
  %s3 = inlined_call_operand.vmem [shape: bf16[4,8,32], index: 3, kind: input, shape index: {}]
  %s4 = inlined_call_operand.vmem [shape: f32[1,32], index: 4, kind: input, shape index: {}]
  %s5 = inlined_call_operand.vmem [shape: f32[1,32], index: 5, kind: input, shape index: {}]
  %s6 = inlined_call_operand.vmem [shape: f32[1,32], index: 6, kind: input, shape index: {}]
  %s7 = inlined_call_operand.vmem [shape: bf16[32,64], index: 7, kind: input, shape index: {}]
  %s8 = inlined_call_operand.vmem [shape: f32[1,64], index: 8, kind: input, shape index: {}]
  %s9 = inlined_call_operand.vmem [shape: bf16[64,32], index: 9, kind: input, shape index: {}]
  %s10 = inlined_call_operand.vmem [shape: f32[1,32], index: 10, kind: input, shape index: {}]
  %s11 = inlined_call_operand.vmem [shape: f32[1,32], index: 11, kind: input, shape index: {}]
  %s12 = inlined_call_operand.vmem [shape: f32[1,32], index: 12, kind: input, shape index: {}]
  %s13 = inlined_call_operand.vmem [shape: f32[8,8], index: 13, kind: input, shape index: {}]
  %s14 = inlined_call_operand.vmem [shape: f32[8,8], index: 14, kind: input, shape index: {}]
  %s15 = inlined_call_operand.vmem [shape: f32[2,8,32], index: 15, kind: output, shape index: {}]
  %s16 = sld [smem:[#allocation0]]
  $region93: #{transformer_forward.3} parent=0
    _
  %s18 = ssub.s32 1, %s16
  %s19 = scalar_select 0, %s18, %s16
  loop: start=0, step=1, limit=4
  $region2: #{transformer_forward.3} parent=0 // loop_pre_header
    _
  $region3: #{transformer_forward.3} parent=0 // loop_header
    %s21 = sphi 0, %s25
    %p22 = scmp.ge.s32.totalorder %s21, 4
    %s31 = sphi 0, %s33
    %s34 = sphi 0, %s31
    %s35 = sphi 0, %s34
    %s51 = sphi 0, %s35
    %s55 = sphi 0, %s55
    %s57 = sphi 0, %s55
    %s58 = sphi 0, %s57
    %s72 = sphi 0, %s58
    %s76 = sphi 0, %s76
    %s78 = sphi 0, %s76
    %s79 = sphi 0, %s78
    %s93 = sphi 0, %s79
    %s97 = sphi 0, %s97
    %s99 = sphi 0, %s97
    %s100 = sphi 0, %s99
    %s114 = sphi 0, %s100
    %s118 = sphi 0, %s118
    %s120 = sphi 0, %s118
    %s121 = sphi 0, %s120
    %s135 = sphi 0, %s121
    %s139 = sphi 0, %s139
    %s141 = sphi 0, %s139
    %s142 = sphi 0, %s141
    %s156 = sphi 0, %s142
    %s160 = sphi 0, %s160
    %s162 = sphi 0, %s160
    %s163 = sphi 0, %s162
    %s177 = sphi 0, %s163
    %s181 = sphi 0, %s181
    %s183 = sphi 0, %s181
    %s184 = sphi 0, %s183
    %s198 = sphi 0, %s184
    %s202 = sphi 0, %s202
    %s204 = sphi 0, %s202
    %s205 = sphi 0, %s204
    %s219 = sphi 0, %s205
    %s223 = sphi 0, %s223
    %s225 = sphi 0, %s223
    %s226 = sphi 0, %s225
    %s240 = sphi 0, %s226
    %s244 = sphi 0, %s244
    %s246 = sphi 0, %s244
    %s247 = sphi 0, %s246
    %s261 = sphi 0, %s247
    %s265 = sphi 0, %s265
    %s267 = sphi 0, %s265
    %s268 = sphi 0, %s267
    %s282 = sphi 0, %s268
    %s286 = sphi 0, %s286
    %s288 = sphi 0, %s286
    %s289 = sphi 0, %s288
    %s303 = sphi 0, %s289
    %s307 = sphi 0, %s307
    %s309 = sphi 0, %s307
    %s310 = sphi 0, %s309
    %s324 = sphi 0, %s310
    %s328 = sphi 0, %s328
    %s330 = sphi 0, %s328
    %s331 = sphi 0, %s330
    %s345 = sphi 0, %s331
    %s351 = sphi 0, %s353
    %s354 = sphi 0, %s351
    %s355 = sphi 0, %s354
    %s371 = sphi 0, %s355
  $region4: #{transformer_forward.3} parent=0 // loop_header_branch
    %24 = sbr.rel (%p22) target = $region8
  $region5: #{transformer_forward.3} parent=0 // loop_body
    %s26 = ssub.s32 %s21, 1
    %s27 = ssub.s32 %s21, 2
    %s28 = sadd.s32 %s21, 1
    %s29 = ssub.s32 %s21, %s28
    %p30 = scmp.eq.s32.totalorder %s29, 0
    %s32 = sadd.s32 %s31, 1
    %s33 = scalar_select %p30, %s31, %s32
    %p36 = pneg %p30
    %p37 = scmp.eq.s32.totalorder %s21, 1
    %p38 = por %p36, %p37
    %p39 = scmp.ne.s32.totalorder %s31, %s34
    %p40 = scmp.eq.s32.totalorder %s21, 0
    %p41 = por %p39, %p40
    %p42 = scmp.ne.s32.totalorder %s31, %s34
    %p43 = scmp.eq.s32.totalorder %s26, 1
    %p44 = por %p42, %p43
    %p45 = scmp.ne.s32.totalorder %s34, %s35
    %p46 = scmp.eq.s32.totalorder %s26, 0
    %p47 = por %p45, %p46
    %p48 = scmp.ne.s32.totalorder %s34, %s35
    %p49 = scmp.eq.s32.totalorder %s27, 1
    %p50 = por %p48, %p49
    %p52 = scmp.ne.s32.totalorder %s35, %s51
    %p53 = scmp.eq.s32.totalorder %s27, 0
    %p54 = por %p52, %p53
    %s56 = sadd.s32 %s55, 1
    %p59 = scmp.eq.s32.totalorder %s21, 1
    %p60 = scmp.ne.s32.totalorder %s55, %s57
    %p61 = scmp.eq.s32.totalorder %s21, 0
    %p62 = por %p60, %p61
    %p63 = scmp.ne.s32.totalorder %s55, %s57
    %p64 = scmp.eq.s32.totalorder %s26, 1
    %p65 = por %p63, %p64
    %p66 = scmp.ne.s32.totalorder %s57, %s58
    %p67 = scmp.eq.s32.totalorder %s26, 0
    %p68 = por %p66, %p67
    %p69 = scmp.ne.s32.totalorder %s57, %s58
    %p70 = scmp.eq.s32.totalorder %s27, 1
    %p71 = por %p69, %p70
    %p73 = scmp.ne.s32.totalorder %s58, %s72
    %p74 = scmp.eq.s32.totalorder %s27, 0
    %p75 = por %p73, %p74
    %s77 = sadd.s32 %s76, 1
    %p80 = scmp.eq.s32.totalorder %s21, 1
    %p81 = scmp.ne.s32.totalorder %s76, %s78
    %p82 = scmp.eq.s32.totalorder %s21, 0
    %p83 = por %p81, %p82
    %p84 = scmp.ne.s32.totalorder %s76, %s78
    %p85 = scmp.eq.s32.totalorder %s26, 1
    %p86 = por %p84, %p85
    %p87 = scmp.ne.s32.totalorder %s78, %s79
    %p88 = scmp.eq.s32.totalorder %s26, 0
    %p89 = por %p87, %p88
    %p90 = scmp.ne.s32.totalorder %s78, %s79
    %p91 = scmp.eq.s32.totalorder %s27, 1
    %p92 = por %p90, %p91
    %p94 = scmp.ne.s32.totalorder %s79, %s93
    %p95 = scmp.eq.s32.totalorder %s27, 0
    %p96 = por %p94, %p95
    %s98 = sadd.s32 %s97, 1
    %p101 = scmp.eq.s32.totalorder %s21, 1
    %p102 = scmp.ne.s32.totalorder %s97, %s99
    %p103 = scmp.eq.s32.totalorder %s21, 0
    %p104 = por %p102, %p103
    %p105 = scmp.ne.s32.totalorder %s97, %s99
    %p106 = scmp.eq.s32.totalorder %s26, 1
    %p107 = por %p105, %p106
    %p108 = scmp.ne.s32.totalorder %s99, %s100
    %p109 = scmp.eq.s32.totalorder %s26, 0
    %p110 = por %p108, %p109
    %p111 = scmp.ne.s32.totalorder %s99, %s100
    %p112 = scmp.eq.s32.totalorder %s27, 1
    %p113 = por %p111, %p112
    %p115 = scmp.ne.s32.totalorder %s100, %s114
    %p116 = scmp.eq.s32.totalorder %s27, 0
    %p117 = por %p115, %p116
    %s119 = sadd.s32 %s118, 1
    %p122 = scmp.eq.s32.totalorder %s21, 1
    %p123 = scmp.ne.s32.totalorder %s118, %s120
    %p124 = scmp.eq.s32.totalorder %s21, 0
    %p125 = por %p123, %p124
    %p126 = scmp.ne.s32.totalorder %s118, %s120
    %p127 = scmp.eq.s32.totalorder %s26, 1
    %p128 = por %p126, %p127
    %p129 = scmp.ne.s32.totalorder %s120, %s121
    %p130 = scmp.eq.s32.totalorder %s26, 0
    %p131 = por %p129, %p130
    %p132 = scmp.ne.s32.totalorder %s120, %s121
    %p133 = scmp.eq.s32.totalorder %s27, 1
    %p134 = por %p132, %p133
    %p136 = scmp.ne.s32.totalorder %s121, %s135
    %p137 = scmp.eq.s32.totalorder %s27, 0
    %p138 = por %p136, %p137
    %s140 = sadd.s32 %s139, 1
    %p143 = scmp.eq.s32.totalorder %s21, 1
    %p144 = scmp.ne.s32.totalorder %s139, %s141
    %p145 = scmp.eq.s32.totalorder %s21, 0
    %p146 = por %p144, %p145
    %p147 = scmp.ne.s32.totalorder %s139, %s141
    %p148 = scmp.eq.s32.totalorder %s26, 1
    %p149 = por %p147, %p148
    %p150 = scmp.ne.s32.totalorder %s141, %s142
    %p151 = scmp.eq.s32.totalorder %s26, 0
    %p152 = por %p150, %p151
    %p153 = scmp.ne.s32.totalorder %s141, %s142
    %p154 = scmp.eq.s32.totalorder %s27, 1
    %p155 = por %p153, %p154
    %p157 = scmp.ne.s32.totalorder %s142, %s156
    %p158 = scmp.eq.s32.totalorder %s27, 0
    %p159 = por %p157, %p158
    %s161 = sadd.s32 %s160, 1
    %p164 = scmp.eq.s32.totalorder %s21, 1
    %p165 = scmp.ne.s32.totalorder %s160, %s162
    %p166 = scmp.eq.s32.totalorder %s21, 0
    %p167 = por %p165, %p166
    %p168 = scmp.ne.s32.totalorder %s160, %s162
    %p169 = scmp.eq.s32.totalorder %s26, 1
    %p170 = por %p168, %p169
    %p171 = scmp.ne.s32.totalorder %s162, %s163
    %p172 = scmp.eq.s32.totalorder %s26, 0
    %p173 = por %p171, %p172
    %p174 = scmp.ne.s32.totalorder %s162, %s163
    %p175 = scmp.eq.s32.totalorder %s27, 1
    %p176 = por %p174, %p175
    %p178 = scmp.ne.s32.totalorder %s163, %s177
    %p179 = scmp.eq.s32.totalorder %s27, 0
    %p180 = por %p178, %p179
    %s182 = sadd.s32 %s181, 1
    %p185 = scmp.eq.s32.totalorder %s21, 1
    %p186 = scmp.ne.s32.totalorder %s181, %s183
    %p187 = scmp.eq.s32.totalorder %s21, 0
    %p188 = por %p186, %p187
    %p189 = scmp.ne.s32.totalorder %s181, %s183
    %p190 = scmp.eq.s32.totalorder %s26, 1
    %p191 = por %p189, %p190
    %p192 = scmp.ne.s32.totalorder %s183, %s184
    %p193 = scmp.eq.s32.totalorder %s26, 0
    %p194 = por %p192, %p193
    %p195 = scmp.ne.s32.totalorder %s183, %s184
    %p196 = scmp.eq.s32.totalorder %s27, 1
    %p197 = por %p195, %p196
    %p199 = scmp.ne.s32.totalorder %s184, %s198
    %p200 = scmp.eq.s32.totalorder %s27, 0
    %p201 = por %p199, %p200
    %s203 = sadd.s32 %s202, 1
    %p206 = scmp.eq.s32.totalorder %s21, 1
    %p207 = scmp.ne.s32.totalorder %s202, %s204
    %p208 = scmp.eq.s32.totalorder %s21, 0
    %p209 = por %p207, %p208
    %p210 = scmp.ne.s32.totalorder %s202, %s204
    %p211 = scmp.eq.s32.totalorder %s26, 1
    %p212 = por %p210, %p211
    %p213 = scmp.ne.s32.totalorder %s204, %s205
    %p214 = scmp.eq.s32.totalorder %s26, 0
    %p215 = por %p213, %p214
    %p216 = scmp.ne.s32.totalorder %s204, %s205
    %p217 = scmp.eq.s32.totalorder %s27, 1
    %p218 = por %p216, %p217
    %p220 = scmp.ne.s32.totalorder %s205, %s219
    %p221 = scmp.eq.s32.totalorder %s27, 0
    %p222 = por %p220, %p221
    %s224 = sadd.s32 %s223, 1
    %p227 = scmp.eq.s32.totalorder %s21, 1
    %p228 = scmp.ne.s32.totalorder %s223, %s225
    %p229 = scmp.eq.s32.totalorder %s21, 0
    %p230 = por %p228, %p229
    %p231 = scmp.ne.s32.totalorder %s223, %s225
    %p232 = scmp.eq.s32.totalorder %s26, 1
    %p233 = por %p231, %p232
    %p234 = scmp.ne.s32.totalorder %s225, %s226
    %p235 = scmp.eq.s32.totalorder %s26, 0
    %p236 = por %p234, %p235
    %p237 = scmp.ne.s32.totalorder %s225, %s226
    %p238 = scmp.eq.s32.totalorder %s27, 1
    %p239 = por %p237, %p238
    %p241 = scmp.ne.s32.totalorder %s226, %s240
    %p242 = scmp.eq.s32.totalorder %s27, 0
    %p243 = por %p241, %p242
    %s245 = sadd.s32 %s244, 1
    %p248 = scmp.eq.s32.totalorder %s21, 1
    %p249 = scmp.ne.s32.totalorder %s244, %s246
    %p250 = scmp.eq.s32.totalorder %s21, 0
    %p251 = por %p249, %p250
    %p252 = scmp.ne.s32.totalorder %s244, %s246
    %p253 = scmp.eq.s32.totalorder %s26, 1
    %p254 = por %p252, %p253
    %p255 = scmp.ne.s32.totalorder %s246, %s247
    %p256 = scmp.eq.s32.totalorder %s26, 0
    %p257 = por %p255, %p256
    %p258 = scmp.ne.s32.totalorder %s246, %s247
    %p259 = scmp.eq.s32.totalorder %s27, 1
    %p260 = por %p258, %p259
    %p262 = scmp.ne.s32.totalorder %s247, %s261
    %p263 = scmp.eq.s32.totalorder %s27, 0
    %p264 = por %p262, %p263
    %s266 = sadd.s32 %s265, 1
    %p269 = scmp.eq.s32.totalorder %s21, 1
    %p270 = scmp.ne.s32.totalorder %s265, %s267
    %p271 = scmp.eq.s32.totalorder %s21, 0
    %p272 = por %p270, %p271
    %p273 = scmp.ne.s32.totalorder %s265, %s267
    %p274 = scmp.eq.s32.totalorder %s26, 1
    %p275 = por %p273, %p274
    %p276 = scmp.ne.s32.totalorder %s267, %s268
    %p277 = scmp.eq.s32.totalorder %s26, 0
    %p278 = por %p276, %p277
    %p279 = scmp.ne.s32.totalorder %s267, %s268
    %p280 = scmp.eq.s32.totalorder %s27, 1
    %p281 = por %p279, %p280
    %p283 = scmp.ne.s32.totalorder %s268, %s282
    %p284 = scmp.eq.s32.totalorder %s27, 0
    %p285 = por %p283, %p284
    %s287 = sadd.s32 %s286, 1
    %p290 = scmp.eq.s32.totalorder %s21, 1
    %p291 = scmp.ne.s32.totalorder %s286, %s288
    %p292 = scmp.eq.s32.totalorder %s21, 0
    %p293 = por %p291, %p292
    %p294 = scmp.ne.s32.totalorder %s286, %s288
    %p295 = scmp.eq.s32.totalorder %s26, 1
    %p296 = por %p294, %p295
    %p297 = scmp.ne.s32.totalorder %s288, %s289
    %p298 = scmp.eq.s32.totalorder %s26, 0
    %p299 = por %p297, %p298
    %p300 = scmp.ne.s32.totalorder %s288, %s289
    %p301 = scmp.eq.s32.totalorder %s27, 1
    %p302 = por %p300, %p301
    %p304 = scmp.ne.s32.totalorder %s289, %s303
    %p305 = scmp.eq.s32.totalorder %s27, 0
    %p306 = por %p304, %p305
    %s308 = sadd.s32 %s307, 1
    %p311 = scmp.eq.s32.totalorder %s21, 1
    %p312 = scmp.ne.s32.totalorder %s307, %s309
    %p313 = scmp.eq.s32.totalorder %s21, 0
    %p314 = por %p312, %p313
    %p315 = scmp.ne.s32.totalorder %s307, %s309
    %p316 = scmp.eq.s32.totalorder %s26, 1
    %p317 = por %p315, %p316
    %p318 = scmp.ne.s32.totalorder %s309, %s310
    %p319 = scmp.eq.s32.totalorder %s26, 0
    %p320 = por %p318, %p319
    %p321 = scmp.ne.s32.totalorder %s309, %s310
    %p322 = scmp.eq.s32.totalorder %s27, 1
    %p323 = por %p321, %p322
    %p325 = scmp.ne.s32.totalorder %s310, %s324
    %p326 = scmp.eq.s32.totalorder %s27, 0
    %p327 = por %p325, %p326
    %s329 = sadd.s32 %s328, 1
    %p332 = scmp.eq.s32.totalorder %s21, 1
    %p333 = scmp.ne.s32.totalorder %s328, %s330
    %p334 = scmp.eq.s32.totalorder %s21, 0
    %p335 = por %p333, %p334
    %p336 = scmp.ne.s32.totalorder %s328, %s330
    %p337 = scmp.eq.s32.totalorder %s26, 1
    %p338 = por %p336, %p337
    %p339 = scmp.ne.s32.totalorder %s330, %s331
    %p340 = scmp.eq.s32.totalorder %s26, 0
    %p341 = por %p339, %p340
    %p342 = scmp.ne.s32.totalorder %s330, %s331
    %p343 = scmp.eq.s32.totalorder %s27, 1
    %p344 = por %p342, %p343
    %p346 = scmp.ne.s32.totalorder %s331, %s345
    %p347 = scmp.eq.s32.totalorder %s27, 0
    %p348 = por %p346, %p347
    %s349 = ssub.s32 %s21, %s28
    %p350 = scmp.eq.s32.totalorder %s349, 0
    %s352 = sadd.s32 %s351, 1
    %s353 = scalar_select %p350, %s351, %s352
    %p356 = pneg %p350
    %p357 = scmp.eq.s32.totalorder %s21, 1
    %p358 = por %p356, %p357
    %p359 = scmp.ne.s32.totalorder %s351, %s354
    %p360 = scmp.eq.s32.totalorder %s21, 0
    %p361 = por %p359, %p360
    %p362 = scmp.ne.s32.totalorder %s351, %s354
    %p363 = scmp.eq.s32.totalorder %s26, 1
    %p364 = por %p362, %p363
    %p365 = scmp.ne.s32.totalorder %s354, %s355
    %p366 = scmp.eq.s32.totalorder %s26, 0
    %p367 = por %p365, %p366
    %p368 = scmp.ne.s32.totalorder %s354, %s355
    %p369 = scmp.eq.s32.totalorder %s27, 1
    %p370 = por %p368, %p369
    %p372 = scmp.ne.s32.totalorder %s355, %s371
    %p373 = scmp.eq.s32.totalorder %s27, 0
    %p374 = por %p372, %p373
    %p375 = scmp.le.s32.totalorder 1, %s21
    %p376 = scmp.lt.s32.totalorder %s21, 3
    %p377 = pnand %p375, %p376
    %p378 = pneg %p377
    // Predicated region
    $region9: #{transformer_forward.3} parent=5 // pred_check
      _
    $region10: #{transformer_forward.3} parent=5 // pred_check_branch
      %380 = sbr.rel (%p377) target = $region12
    $region11: #{transformer_forward.3} parent=5 // pred_region
      %s381 = ssub.s32 %s21, 1
      // Predicated region
      $region13: #{transformer_forward.3} parent=11 // pred_check
        %p382 = pneg %p68
      $region14: #{transformer_forward.3} parent=11 // pred_check_branch
        %384 = sbr.rel (%p382) target = $region16
      $region15: #{transformer_forward.3} parent=11 // pred_region
        _
      $region16: #{transformer_forward.3} parent=11 // pred_fallthru
        _
      // Predicated region
      $region17: #{transformer_forward.3} parent=11 // pred_check
        %p385 = pneg %p89
      $region18: #{transformer_forward.3} parent=11 // pred_check_branch
        %387 = sbr.rel (%p385) target = $region20
      $region19: #{transformer_forward.3} parent=11 // pred_region
        _
      $region20: #{transformer_forward.3} parent=11 // pred_fallthru
        _
      // Predicated region
      $region21: #{transformer_forward.3} parent=11 // pred_check
        %p388 = pneg %p110
      $region22: #{transformer_forward.3} parent=11 // pred_check_branch
        %390 = sbr.rel (%p388) target = $region24
      $region23: #{transformer_forward.3} parent=11 // pred_region
        _
      $region24: #{transformer_forward.3} parent=11 // pred_fallthru
        _
      // Predicated region
      $region25: #{transformer_forward.3} parent=11 // pred_check
        %p391 = pneg %p131
      $region26: #{transformer_forward.3} parent=11 // pred_check_branch
        %393 = sbr.rel (%p391) target = $region28
      $region27: #{transformer_forward.3} parent=11 // pred_region
        _
      $region28: #{transformer_forward.3} parent=11 // pred_fallthru
        _
      // Predicated region
      $region29: #{transformer_forward.3} parent=11 // pred_check
        %p394 = pneg %p152
      $region30: #{transformer_forward.3} parent=11 // pred_check_branch
        %396 = sbr.rel (%p394) target = $region32
      $region31: #{transformer_forward.3} parent=11 // pred_region
        _
      $region32: #{transformer_forward.3} parent=11 // pred_fallthru
        _
      // Predicated region
      $region33: #{transformer_forward.3} parent=11 // pred_check
        %p397 = pneg %p173
      $region34: #{transformer_forward.3} parent=11 // pred_check_branch
        %399 = sbr.rel (%p397) target = $region36
      $region35: #{transformer_forward.3} parent=11 // pred_region
        _
      $region36: #{transformer_forward.3} parent=11 // pred_fallthru
        _
      // Predicated region
      $region37: #{transformer_forward.3} parent=11 // pred_check
        %p400 = pneg %p194
      $region38: #{transformer_forward.3} parent=11 // pred_check_branch
        %402 = sbr.rel (%p400) target = $region40
      $region39: #{transformer_forward.3} parent=11 // pred_region
        _
      $region40: #{transformer_forward.3} parent=11 // pred_fallthru
        _
      // Predicated region
      $region41: #{transformer_forward.3} parent=11 // pred_check
        %p403 = pneg %p215
      $region42: #{transformer_forward.3} parent=11 // pred_check_branch
        %405 = sbr.rel (%p403) target = $region44
      $region43: #{transformer_forward.3} parent=11 // pred_region
        _
      $region44: #{transformer_forward.3} parent=11 // pred_fallthru
        _
      // Predicated region
      $region45: #{transformer_forward.3} parent=11 // pred_check
        %p406 = pneg %p236
      $region46: #{transformer_forward.3} parent=11 // pred_check_branch
        %408 = sbr.rel (%p406) target = $region48
      $region47: #{transformer_forward.3} parent=11 // pred_region
        _
      $region48: #{transformer_forward.3} parent=11 // pred_fallthru
        _
      // Predicated region
      $region49: #{transformer_forward.3} parent=11 // pred_check
        %p409 = pneg %p257
      $region50: #{transformer_forward.3} parent=11 // pred_check_branch
        %411 = sbr.rel (%p409) target = $region52
      $region51: #{transformer_forward.3} parent=11 // pred_region
        _
      $region52: #{transformer_forward.3} parent=11 // pred_fallthru
        _
      // Predicated region
      $region53: #{transformer_forward.3} parent=11 // pred_check
        %p412 = pneg %p278
      $region54: #{transformer_forward.3} parent=11 // pred_check_branch
        %414 = sbr.rel (%p412) target = $region56
      $region55: #{transformer_forward.3} parent=11 // pred_region
        _
      $region56: #{transformer_forward.3} parent=11 // pred_fallthru
        _
      // Predicated region
      $region57: #{transformer_forward.3} parent=11 // pred_check
        %p415 = pneg %p299
      $region58: #{transformer_forward.3} parent=11 // pred_check_branch
        %417 = sbr.rel (%p415) target = $region60
      $region59: #{transformer_forward.3} parent=11 // pred_region
        _
      $region60: #{transformer_forward.3} parent=11 // pred_fallthru
        _
      // Predicated region
      $region61: #{transformer_forward.3} parent=11 // pred_check
        %p418 = pneg %p320
      $region62: #{transformer_forward.3} parent=11 // pred_check_branch
        %420 = sbr.rel (%p418) target = $region64
      $region63: #{transformer_forward.3} parent=11 // pred_region
        _
      $region64: #{transformer_forward.3} parent=11 // pred_fallthru
        _
      // Predicated region
      $region65: #{transformer_forward.3} parent=11 // pred_check
        %p421 = pneg %p341
      $region66: #{transformer_forward.3} parent=11 // pred_check_branch
        %423 = sbr.rel (%p421) target = $region68
      $region67: #{transformer_forward.3} parent=11 // pred_region
        _
      $region68: #{transformer_forward.3} parent=11 // pred_fallthru
        _
    $region12: #{transformer_forward.3} parent=5 // pred_fallthru
      _
    %p424 = scmp.lt.s32.totalorder %s21, 2
    // Predicated region
    $region69: #{transformer_forward.3} parent=5 // pred_check
      %p425 = pneg %p424
    $region70: #{transformer_forward.3} parent=5 // pred_check_branch
      %427 = sbr.rel (%p425) target = $region72
    $region71: #{transformer_forward.3} parent=5 // pred_region
      // Predicated region
      $region73: #{transformer_forward.3} parent=71 // pred_check
        %p428 = pneg %p41
      $region74: #{transformer_forward.3} parent=71 // pred_check_branch
        %430 = sbr.rel (%p428) target = $region76
      $region75: #{transformer_forward.3} parent=71 // pred_region
        %p431 = scmp.lt.s32.totalorder %s21, 1
        %s432 = scalar_select %p431, %s21, 1
        %s433 = smul.addr %s432, 8
        %s434 = scalar_lea.vmem %s0, %s433
      $region76: #{transformer_forward.3} parent=71 // pred_fallthru
        _
    $region72: #{transformer_forward.3} parent=5 // pred_fallthru
      _
    %p435 = scmp.le.s32.totalorder 1, %s21
    %p436 = scmp.lt.s32.totalorder %s21, 3
    %p437 = pnand %p435, %p436
    %p438 = pneg %p437
    // Predicated region
    $region77: #{transformer_forward.3} parent=5 // pred_check
      _
    $region78: #{transformer_forward.3} parent=5 // pred_check_branch
      %440 = sbr.rel (%p437) target = $region80
    $region79: #{transformer_forward.3} parent=5 // pred_region
      %s441 = ssub.s32 %s21, 1
      %p442 = scmp.lt.s32.totalorder %s26, 1
      %s443 = scalar_select %p442, %s26, 1
      %s444 = smul.addr %s443, 8
      %s445 = scalar_lea.vmem %s0, %s444
      %p446 = pneg %p47
      %p447 = pneg %p44
      %p448 = pneg %p68
      %p449 = pneg %p65
      %p450 = pneg %p89
      %p451 = pneg %p86
      %p452 = pneg %p110
      %p453 = pneg %p107
      %p454 = pneg %p131
      %p455 = pneg %p128
      %p456 = pneg %p152
      %p457 = pneg %p149
      %p458 = pneg %p173
      %p459 = pneg %p170
      %p460 = pneg %p194
      %p461 = pneg %p191
      %p462 = pneg %p215
      %p463 = pneg %p212
      %p464 = pneg %p236
      %p465 = pneg %p233
      %p466 = pneg %p257
      %p467 = pneg %p254
      %p468 = pneg %p278
      %p469 = pneg %p275
      %p470 = pneg %p299
      %p471 = pneg %p296
      %p472 = pneg %p320
      %p473 = pneg %p317
      %p474 = pneg %p341
      %p475 = pneg %p338
      %p476 = pneg %p367
      %p477 = pneg %p364
      %p478 = scmp.lt.s32.totalorder %s26, 1
      %s479 = scalar_select %p478, %s26, 1
      %s480 = smul.addr %s479, 8
      %s481 = scalar_lea.vmem %s15, %s480
      %p482 = scmp.lt.s32.totalorder %s26, 1
      %s483 = scalar_select %p482, %s26, 1
      %s484 = smul.addr %s483, 8
      %s485 = scalar_lea.vmem %s0, %s484
      %p486 = scmp.lt.s32.totalorder %s26, 1
      %s487 = scalar_select %p486, %s26, 1
      %s488 = smul.addr %s487, 8
      %s489 = scalar_lea.vmem %s15, %s488
      %v491 = vld [vmem:[%s485] sm:$0xff]
      %v492 = vld [vmem:[%s5] sm:$0x1]
      %v493 = vld [vmem:[%s6] sm:$0x1]
      %vm494 = vcmask 261120
      %v495 = vsel %vm494, %v491, 0.0
      %496 = vadd.xlane.f32.xlu0 %v495
      %v497 = vpop.xlane.xlu0 %496
      %v498 = vrcp.pop 32.0
      %v499 = vmul.f32 %v497, %v498
      %v500 = vsub.f32 %v491, %v499
      %v501 = vmul.f32 %v500, %v500
      %v502 = vsel %vm494, %v501, 0.0
      %503 = vadd.xlane.f32.xlu0 %v502
      %v504 = vpop.xlane.xlu0 %503
      %v505 = vmul.f32 %v504, %v498
      %v506 = vadd.f32 %v505, 1e-06
      %v507 = vrsqrt.pop %v506
      %v508 = vmul.f32 %v500, %v507
      %v510 = vlaneseq
      %v511 = vshrl.u32 %v510, 7
      %v512 = vsub.s32 0, %v511
      %v513 = vrot.slane %v492, %v512
      %v515 = vmul.f32 %v508, %v513
      %v517 = vlaneseq
      %v518 = vshrl.u32 %v517, 7
      %v519 = vsub.s32 0, %v518
      %v520 = vrot.slane %v493, %v519
      %v522 = vadd.f32 %v515, %v520
      %v523 = vpack.c.bf16 %v522, %v522
      %v524 = vld [vmem:[%s1] sm:$0xf]
      %v525 = vld [vmem:[%s1 + $0x4] sm:$0xf]
      %v526 = vld [vmem:[%s1 + $0x8] sm:$0xf]
      %v527 = vld [vmem:[%s1 + $0xc] sm:$0xf]
      %v528 = vld [vmem:[%s2] sm:$0x1]
      %v530 = vlaneseq
      %v531 = vshrl.u32 %v530, 7
      %v532 = vsub.s32 0, %v531
      %v533 = vrot.slane %v528, %v532
      %v539 = vunpack.c.l.b16 %v524
      %v540 = vunpack.c.l.b16 %v525
      %v541 = vunpack.c.l.b16 %v526
      %v542 = vunpack.c.l.b16 %v527
      %v543 = vpack.c.b16 %v540, %v539
      %v544 = vpack.c.b16 %v542, %v541
      %v548 = vsel %vm494, %v523, 0
      %550 = vmatprep.subr.bf16.mxu0 0
      %551 = vmatpush1.bf16.msra.mxu0 %v543
      %552 = vmatprep.subr.bf16.mxu0 0
      %553 = vmatpush1.bf16.msra.mxu0 %v544
      %554 = vmatprep.subr.bf16.mxu0 0
      %555 = vmatpush1.bf16.msra.mxu0 0
      %556 = vmatprep.subr.bf16.mxu0 0
      %557 = vmatpush1.bf16.msra.mxu0 0
      %558 = vmatprep.subr.bf16.mxu0 0
      %559 = vmatpush1.bf16.msra.mxu0 0
      %560 = vmatprep.subr.bf16.mxu0 0
      %561 = vmatpush1.bf16.msra.mxu0 0
      %562 = vmatprep.subr.bf16.mxu0 0
      %563 = vmatpush1.bf16.msra.mxu0 0
      %564 = vmatprep.subr.bf16.mxu0 0
      %565 = vmatpush1.bf16.msra.mxu0 0
      %566 = vmatprep.subr.bf16.mxu0 0
      %567 = vmatpush1.bf16.msra.mxu0 0
      %568 = vmatprep.subr.bf16.mxu0 0
      %569 = vmatpush1.bf16.msra.mxu0 0
      %570 = vmatprep.subr.bf16.mxu0 0
      %571 = vmatpush1.bf16.msra.mxu0 0
      %572 = vmatprep.subr.bf16.mxu0 0
      %573 = vmatpush1.bf16.msra.mxu0 0
      %574 = vmatprep.subr.bf16.mxu0 0
      %575 = vmatpush1.bf16.msra.mxu0 0
      %576 = vmatprep.subr.bf16.mxu0 0
      %577 = vmatpush1.bf16.msra.mxu0 0
      %578 = vmatprep.subr.bf16.mxu0 0
      %579 = vmatpush1.bf16.msra.mxu0 0
      %580 = vmatprep.subr.bf16.mxu0 0
      %581 = vmatpush1.bf16.msra.mxu0 0
      %582 = vmatprep.mubr.bf16.mxu0 0
      %583 = vmatmul.mubr.bf16.gmra.mrb[0].mxu0 %v548
      %v584 = vpop.f32.mrb[0].mxu0
      %v585 = vadd.f32 %v533, %v584
      %v586 = vpop.f32.mrb[0].mxu0
      %v587 = vpop.f32.mrb[0].mxu0
      %v588 = vpop.f32.mrb[0].mxu0
      %589 = vdwg.mxu0
      %591 = vrot.lane.b32.xlu0 %v585, 120
      %v592 = vpop.permute.xlu0 %591
      %594 = vrot.lane.b32.xlu0 %v585, 112
      %v595 = vpop.permute.xlu0 %594
      %597 = vrot.lane.b32.xlu0 %v585, 104
      %v598 = vpop.permute.xlu0 %597
      %600 = vrot.lane.b32.xlu0 %v585, 96
      %v601 = vpop.permute.xlu0 %600
      %603 = vrot.lane.b32.xlu0 %v585, 88
      %v604 = vpop.permute.xlu0 %603
      %606 = vrot.lane.b32.xlu0 %v585, 80
      %v607 = vpop.permute.xlu0 %606
      %609 = vrot.lane.b32.xlu0 %v585, 72
      %v610 = vpop.permute.xlu0 %609
      %612 = vrot.lane.b32.xlu0 %v585, 64
      %v613 = vpop.permute.xlu0 %612
      %615 = vrot.lane.b32.xlu0 %v585, 56
      %v616 = vpop.permute.xlu0 %615
      %618 = vrot.lane.b32.xlu0 %v585, 48
      %v619 = vpop.permute.xlu0 %618
      %621 = vrot.lane.b32.xlu0 %v585, 40
      %v622 = vpop.permute.xlu0 %621
      %v624 = vld [vmem:[%s13] sm:$0xff]
      %v625 = vld [vmem:[%s14] sm:$0xff]
      %v626 = vmul.f32 %v585, %v624
      %v627 = vmul.f32 %v592, %v624
      %v628 = vmul.f32 %v595, %v624
      %v629 = vmul.f32 %v598, %v624
      %630 = vrot.lane.b32.xlu0 %v585, 124
      %v631 = vpop.permute.xlu0 %630
      %632 = vrot.lane.b32.xlu0 %v592, 124
      %v633 = vpop.permute.xlu0 %632
      %634 = vrot.lane.b32.xlu0 %v595, 124
      %v635 = vpop.permute.xlu0 %634
      %636 = vrot.lane.b32.xlu0 %v598, 124
      %v637 = vpop.permute.xlu0 %636
      %642 = vrot.lane.b32.xlu0 %v585, 4
      %v643 = vpop.permute.xlu0 %642
      %644 = vrot.lane.b32.xlu0 %v592, 4
      %v645 = vpop.permute.xlu0 %644
      %646 = vrot.lane.b32.xlu0 %v595, 4
      %v647 = vpop.permute.xlu0 %646
      %648 = vrot.lane.b32.xlu0 %v598, 4
      %v649 = vpop.permute.xlu0 %648
      %vm654 = vcmask 31744
      %v655 = vsel %vm654, %v631, %v643
      %v656 = vsel %vm654, %v633, %v645
      %v657 = vsel %vm654, %v635, %v647
      %v658 = vsel %vm654, %v637, %v649
      %v659 = vmul.f32 %v655, %v625
      %v660 = vmul.f32 %v656, %v625
      %v661 = vmul.f32 %v657, %v625
      %v662 = vmul.f32 %v658, %v625
      %v663 = vadd.f32 %v626, %v659
      %v664 = vadd.f32 %v627, %v660
      %v665 = vadd.f32 %v628, %v661
      %v666 = vadd.f32 %v629, %v662
      %v667 = vmul.f32 %v601, %v624
      %v668 = vmul.f32 %v604, %v624
      %v669 = vmul.f32 %v607, %v624
      %v670 = vmul.f32 %v610, %v624
      %671 = vrot.lane.b32.xlu0 %v601, 124
      %v672 = vpop.permute.xlu0 %671
      %673 = vrot.lane.b32.xlu0 %v604, 124
      %v674 = vpop.permute.xlu0 %673
      %675 = vrot.lane.b32.xlu0 %v607, 124
      %v676 = vpop.permute.xlu0 %675
      %677 = vrot.lane.b32.xlu0 %v610, 124
      %v678 = vpop.permute.xlu0 %677
      %683 = vrot.lane.b32.xlu0 %v601, 4
      %v684 = vpop.permute.xlu0 %683
      %685 = vrot.lane.b32.xlu0 %v604, 4
      %v686 = vpop.permute.xlu0 %685
      %687 = vrot.lane.b32.xlu0 %v607, 4
      %v688 = vpop.permute.xlu0 %687
      %689 = vrot.lane.b32.xlu0 %v610, 4
      %v690 = vpop.permute.xlu0 %689
      %v695 = vsel %vm654, %v672, %v684
      %v696 = vsel %vm654, %v674, %v686
      %v697 = vsel %vm654, %v676, %v688
      %v698 = vsel %vm654, %v678, %v690
      %v699 = vmul.f32 %v695, %v625
      %v700 = vmul.f32 %v696, %v625
      %v701 = vmul.f32 %v697, %v625
      %v702 = vmul.f32 %v698, %v625
      %v703 = vadd.f32 %v667, %v699
      %v704 = vadd.f32 %v668, %v700
      %v705 = vadd.f32 %v669, %v701
      %v706 = vadd.f32 %v670, %v702
      %v707 = vmul.f32 %v663, 0.35355338
      %v708 = vmul.f32 %v664, 0.35355338
      %v709 = vmul.f32 %v665, 0.35355338
      %v710 = vmul.f32 %v666, 0.35355338
      %v711 = vpack.c.bf16 %v707, %v707
      %v712 = vpack.c.bf16 %v708, %v708
      %v713 = vpack.c.bf16 %v709, %v709
      %v714 = vpack.c.bf16 %v710, %v710
      %v715 = vpack.c.bf16 %v703, %v703
      %v716 = vpack.c.bf16 %v704, %v704
      %v717 = vpack.c.bf16 %v705, %v705
      %v718 = vpack.c.bf16 %v706, %v706
      %v719 = vpack.c.bf16 %v613, %v613
      %v720 = vpack.c.bf16 %v616, %v616
      %v721 = vpack.c.bf16 %v619, %v619
      %v722 = vpack.c.bf16 %v622, %v622
      %vm723 = vcmask 64512
      %v725 = vsel %vm723, %v711, 0
      %v728 = vsel %vm723, %v715, 0
      %730 = vmatprep.subr.bf16.mxu0 0
      %731 = vmatpush1.bf16.xpose.msra.mxu0 %v728
      %732 = vmatprep.subr.bf16.mxu0 0
      %733 = vmatpush1.bf16.xpose.msra.mxu0 0
      %734 = vmatprep.subr.bf16.mxu0 0
      %735 = vmatpush1.bf16.xpose.msra.mxu0 0
      %736 = vmatprep.subr.bf16.mxu0 0
      %737 = vmatpush1.bf16.xpose.msra.mxu0 0
      %738 = vmatprep.subr.bf16.mxu0 0
      %739 = vmatpush1.bf16.xpose.msra.mxu0 0
      %740 = vmatprep.subr.bf16.mxu0 0
      %741 = vmatpush1.bf16.xpose.msra.mxu0 0
      %742 = vmatprep.subr.bf16.mxu0 0
      %743 = vmatpush1.bf16.xpose.msra.mxu0 0
      %744 = vmatprep.subr.bf16.mxu0 0
      %745 = vmatpush1.bf16.xpose.msra.mxu0 0
      %746 = vmatprep.subr.bf16.mxu0 0
      %747 = vmatpush1.bf16.xpose.msra.mxu0 0
      %748 = vmatprep.subr.bf16.mxu0 0
      %749 = vmatpush1.bf16.xpose.msra.mxu0 0
      %750 = vmatprep.subr.bf16.mxu0 0
      %751 = vmatpush1.bf16.xpose.msra.mxu0 0
      %752 = vmatprep.subr.bf16.mxu0 0
      %753 = vmatpush1.bf16.xpose.msra.mxu0 0
      %754 = vmatprep.subr.bf16.mxu0 0
      %755 = vmatpush1.bf16.xpose.msra.mxu0 0
      %756 = vmatprep.subr.bf16.mxu0 0
      %757 = vmatpush1.bf16.xpose.msra.mxu0 0
      %758 = vmatprep.subr.bf16.mxu0 0
      %759 = vmatpush1.bf16.xpose.msra.mxu0 0
      %760 = vmatprep.subr.bf16.mxu0 0
      %761 = vmatpush1.bf16.xpose.msra.mxu0 0
      %762 = vmatprep.mubr.bf16.mxu0 0
      %763 = vmatmul.mubr.bf16.gmra.mrb[0].mxu0 %v725
      %v764 = vpop.f32.mrb[0].mxu0
      %v765 = vadd.f32 0.0, %v764
      %v766 = vpop.f32.mrb[0].mxu0
      %v767 = vpop.f32.mrb[0].mxu0
      %v768 = vpop.f32.mrb[0].mxu0
      %769 = vdwg.mxu0
      %v771 = vsel %vm723, %v712, 0
      %v774 = vsel %vm723, %v716, 0
      %776 = vmatprep.subr.bf16.mxu0 0
      %777 = vmatpush1.bf16.xpose.msra.mxu0 %v774
      %778 = vmatprep.subr.bf16.mxu0 0
      %779 = vmatpush1.bf16.xpose.msra.mxu0 0
      %780 = vmatprep.subr.bf16.mxu0 0
      %781 = vmatpush1.bf16.xpose.msra.mxu0 0
      %782 = vmatprep.subr.bf16.mxu0 0
      %783 = vmatpush1.bf16.xpose.msra.mxu0 0
      %784 = vmatprep.subr.bf16.mxu0 0
      %785 = vmatpush1.bf16.xpose.msra.mxu0 0
      %786 = vmatprep.subr.bf16.mxu0 0
      %787 = vmatpush1.bf16.xpose.msra.mxu0 0
      %788 = vmatprep.subr.bf16.mxu0 0
      %789 = vmatpush1.bf16.xpose.msra.mxu0 0
      %790 = vmatprep.subr.bf16.mxu0 0
      %791 = vmatpush1.bf16.xpose.msra.mxu0 0
      %792 = vmatprep.subr.bf16.mxu0 0
      %793 = vmatpush1.bf16.xpose.msra.mxu0 0
      %794 = vmatprep.subr.bf16.mxu0 0
      %795 = vmatpush1.bf16.xpose.msra.mxu0 0
      %796 = vmatprep.subr.bf16.mxu0 0
      %797 = vmatpush1.bf16.xpose.msra.mxu0 0
      %798 = vmatprep.subr.bf16.mxu0 0
      %799 = vmatpush1.bf16.xpose.msra.mxu0 0
      %800 = vmatprep.subr.bf16.mxu0 0
      %801 = vmatpush1.bf16.xpose.msra.mxu0 0
      %802 = vmatprep.subr.bf16.mxu0 0
      %803 = vmatpush1.bf16.xpose.msra.mxu0 0
      %804 = vmatprep.subr.bf16.mxu0 0
      %805 = vmatpush1.bf16.xpose.msra.mxu0 0
      %806 = vmatprep.subr.bf16.mxu0 0
      %807 = vmatpush1.bf16.xpose.msra.mxu0 0
      %808 = vmatprep.mubr.bf16.mxu0 0
      %809 = vmatmul.mubr.bf16.gmra.mrb[0].mxu0 %v771
      %v810 = vpop.f32.mrb[0].mxu0
      %v811 = vadd.f32 0.0, %v810
      %v812 = vpop.f32.mrb[0].mxu0
      %v813 = vpop.f32.mrb[0].mxu0
      %v814 = vpop.f32.mrb[0].mxu0
      %815 = vdwg.mxu0
      %v817 = vsel %vm723, %v713, 0
      %v820 = vsel %vm723, %v717, 0
      %822 = vmatprep.subr.bf16.mxu0 0
      %823 = vmatpush1.bf16.xpose.msra.mxu0 %v820
      %824 = vmatprep.subr.bf16.mxu0 0
      %825 = vmatpush1.bf16.xpose.msra.mxu0 0
      %826 = vmatprep.subr.bf16.mxu0 0
      %827 = vmatpush1.bf16.xpose.msra.mxu0 0
      %828 = vmatprep.subr.bf16.mxu0 0
      %829 = vmatpush1.bf16.xpose.msra.mxu0 0
      %830 = vmatprep.subr.bf16.mxu0 0
      %831 = vmatpush1.bf16.xpose.msra.mxu0 0
      %832 = vmatprep.subr.bf16.mxu0 0
      %833 = vmatpush1.bf16.xpose.msra.mxu0 0
      %834 = vmatprep.subr.bf16.mxu0 0
      %835 = vmatpush1.bf16.xpose.msra.mxu0 0
      %836 = vmatprep.subr.bf16.mxu0 0
      %837 = vmatpush1.bf16.xpose.msra.mxu0 0
      %838 = vmatprep.subr.bf16.mxu0 0
      %839 = vmatpush1.bf16.xpose.msra.mxu0 0
      %840 = vmatprep.subr.bf16.mxu0 0
      %841 = vmatpush1.bf16.xpose.msra.mxu0 0
      %842 = vmatprep.subr.bf16.mxu0 0
      %843 = vmatpush1.bf16.xpose.msra.mxu0 0
      %844 = vmatprep.subr.bf16.mxu0 0
      %845 = vmatpush1.bf16.xpose.msra.mxu0 0
      %846 = vmatprep.subr.bf16.mxu0 0
      %847 = vmatpush1.bf16.xpose.msra.mxu0 0
      %848 = vmatprep.subr.bf16.mxu0 0
      %849 = vmatpush1.bf16.xpose.msra.mxu0 0
      %850 = vmatprep.subr.bf16.mxu0 0
      %851 = vmatpush1.bf16.xpose.msra.mxu0 0
      %852 = vmatprep.subr.bf16.mxu0 0
      %853 = vmatpush1.bf16.xpose.msra.mxu0 0
      %854 = vmatprep.mubr.bf16.mxu0 0
      %855 = vmatmul.mubr.bf16.gmra.mrb[0].mxu0 %v817
      %v856 = vpop.f32.mrb[0].mxu0
      %v857 = vadd.f32 0.0, %v856
      %v858 = vpop.f32.mrb[0].mxu0
      %v859 = vpop.f32.mrb[0].mxu0
      %v860 = vpop.f32.mrb[0].mxu0
      %861 = vdwg.mxu0
      %v863 = vsel %vm723, %v714, 0
      %v866 = vsel %vm723, %v718, 0
      %868 = vmatprep.subr.bf16.mxu0 0
      %869 = vmatpush1.bf16.xpose.msra.mxu0 %v866
      %870 = vmatprep.subr.bf16.mxu0 0
      %871 = vmatpush1.bf16.xpose.msra.mxu0 0
      %872 = vmatprep.subr.bf16.mxu0 0
      %873 = vmatpush1.bf16.xpose.msra.mxu0 0
      %874 = vmatprep.subr.bf16.mxu0 0
      %875 = vmatpush1.bf16.xpose.msra.mxu0 0
      %876 = vmatprep.subr.bf16.mxu0 0
      %877 = vmatpush1.bf16.xpose.msra.mxu0 0
      %878 = vmatprep.subr.bf16.mxu0 0
      %879 = vmatpush1.bf16.xpose.msra.mxu0 0
      %880 = vmatprep.subr.bf16.mxu0 0
      %881 = vmatpush1.bf16.xpose.msra.mxu0 0
      %882 = vmatprep.subr.bf16.mxu0 0
      %883 = vmatpush1.bf16.xpose.msra.mxu0 0
      %884 = vmatprep.subr.bf16.mxu0 0
      %885 = vmatpush1.bf16.xpose.msra.mxu0 0
      %886 = vmatprep.subr.bf16.mxu0 0
      %887 = vmatpush1.bf16.xpose.msra.mxu0 0
      %888 = vmatprep.subr.bf16.mxu0 0
      %889 = vmatpush1.bf16.xpose.msra.mxu0 0
      %890 = vmatprep.subr.bf16.mxu0 0
      %891 = vmatpush1.bf16.xpose.msra.mxu0 0
      %892 = vmatprep.subr.bf16.mxu0 0
      %893 = vmatpush1.bf16.xpose.msra.mxu0 0
      %894 = vmatprep.subr.bf16.mxu0 0
      %895 = vmatpush1.bf16.xpose.msra.mxu0 0
      %896 = vmatprep.subr.bf16.mxu0 0
      %897 = vmatpush1.bf16.xpose.msra.mxu0 0
      %898 = vmatprep.subr.bf16.mxu0 0
      %899 = vmatpush1.bf16.xpose.msra.mxu0 0
      %900 = vmatprep.mubr.bf16.mxu0 0
      %901 = vmatmul.mubr.bf16.gmra.mrb[0].mxu0 %v863
      %v902 = vpop.f32.mrb[0].mxu0
      %v903 = vadd.f32 0.0, %v902
      %v904 = vpop.f32.mrb[0].mxu0
      %v905 = vpop.f32.mrb[0].mxu0
      %v906 = vpop.f32.mrb[0].mxu0
      %907 = vdwg.mxu0
      %v908 = vsel %vm723, %v765, -inf
      %909 = vmax.xlane.f32.xlu0 %v908
      %v910 = vpop.xlane.xlu0 %909
      %v911 = vsel %vm723, %v811, -inf
      %912 = vmax.xlane.f32.xlu0 %v911
      %v913 = vpop.xlane.xlu0 %912
      %v914 = vsel %vm723, %v857, -inf
      %915 = vmax.xlane.f32.xlu0 %v914
      %v916 = vpop.xlane.xlu0 %915
      %v917 = vsel %vm723, %v903, -inf
      %918 = vmax.xlane.f32.xlu0 %v917
      %v919 = vpop.xlane.xlu0 %918
      %v920 = vsub.f32 %v765, %v910
      %v921 = vsub.f32 %v811, %v913
      %v922 = vsub.f32 %v857, %v916
      %v923 = vsub.f32 %v903, %v919
      %v924 = vmul.f32 %v920, 1.442695
      %v925 = vpow.pop %v924
      %v926 = vmul.f32 %v921, 1.442695
      %v927 = vpow.pop %v926
      %v928 = vmul.f32 %v922, 1.442695
      %v929 = vpow.pop %v928
      %v930 = vmul.f32 %v923, 1.442695
      %v931 = vpow.pop %v930
      %v932 = vsel %vm723, %v925, 0.0
      %933 = vadd.xlane.f32.xlu0 %v932
      %v934 = vpop.xlane.xlu0 %933
      %v935 = vsel %vm723, %v927, 0.0
      %936 = vadd.xlane.f32.xlu0 %v935
      %v937 = vpop.xlane.xlu0 %936
      %v938 = vsel %vm723, %v929, 0.0
      %939 = vadd.xlane.f32.xlu0 %v938
      %v940 = vpop.xlane.xlu0 %939
      %v941 = vsel %vm723, %v931, 0.0
      %942 = vadd.xlane.f32.xlu0 %v941
      %v943 = vpop.xlane.xlu0 %942
      %v944 = vrcp.pop %v934
      %v945 = vrcp.pop %v937
      %v946 = vrcp.pop %v940
      %v947 = vrcp.pop %v943
      %v948 = vmul.f32 %v925, %v944
      %v949 = vmul.f32 %v927, %v945
      %v950 = vmul.f32 %v929, %v946
      %v951 = vmul.f32 %v931, %v947
      %v952 = vpack.c.bf16 %v948, %v948
      %v953 = vpack.c.bf16 %v949, %v949
      %v954 = vpack.c.bf16 %v950, %v950
      %v955 = vpack.c.bf16 %v951, %v951
      %v957 = vsel %vm723, %v952, 0
      %vm959 = vcmask 1043456
      %v961 = vsel %vm959, %v719, 0
      %963 = vmatprep.subr.bf16.mxu0 0
      %964 = vmatpush1.bf16.msra.mxu0 %v961
      %965 = vmatprep.subr.bf16.mxu0 0
      %966 = vmatpush1.bf16.msra.mxu0 0
      %967 = vmatprep.subr.bf16.mxu0 0
      %968 = vmatpush1.bf16.msra.mxu0 0
      %969 = vmatprep.subr.bf16.mxu0 0
      %970 = vmatpush1.bf16.msra.mxu0 0
      %971 = vmatprep.subr.bf16.mxu0 0
      %972 = vmatpush1.bf16.msra.mxu0 0
      %973 = vmatprep.subr.bf16.mxu0 0
      %974 = vmatpush1.bf16.msra.mxu0 0
      %975 = vmatprep.subr.bf16.mxu0 0
      %976 = vmatpush1.bf16.msra.mxu0 0
      %977 = vmatprep.subr.bf16.mxu0 0
      %978 = vmatpush1.bf16.msra.mxu0 0
      %979 = vmatprep.subr.bf16.mxu0 0
      %980 = vmatpush1.bf16.msra.mxu0 0
      %981 = vmatprep.subr.bf16.mxu0 0
      %982 = vmatpush1.bf16.msra.mxu0 0
      %983 = vmatprep.subr.bf16.mxu0 0
      %984 = vmatpush1.bf16.msra.mxu0 0
      %985 = vmatprep.subr.bf16.mxu0 0
      %986 = vmatpush1.bf16.msra.mxu0 0
      %987 = vmatprep.subr.bf16.mxu0 0
      %988 = vmatpush1.bf16.msra.mxu0 0
      %989 = vmatprep.subr.bf16.mxu0 0
      %990 = vmatpush1.bf16.msra.mxu0 0
      %991 = vmatprep.subr.bf16.mxu0 0
      %992 = vmatpush1.bf16.msra.mxu0 0
      %993 = vmatprep.subr.bf16.mxu0 0
      %994 = vmatpush1.bf16.msra.mxu0 0
      %995 = vmatprep.mubr.bf16.mxu0 0
      %996 = vmatmul.mubr.bf16.gmra.mrb[0].mxu0 %v957
      %v997 = vpop.f32.mrb[0].mxu0
      %v998 = vadd.f32 0.0, %v997
      %v999 = vpop.f32.mrb[0].mxu0
      %v1000 = vpop.f32.mrb[0].mxu0
      %v1001 = vpop.f32.mrb[0].mxu0
      %1002 = vdwg.mxu0
      %v1004 = vsel %vm723, %v953, 0
      %v1007 = vsel %vm959, %v720, 0
      %1009 = vmatprep.subr.bf16.mxu0 0
      %1010 = vmatpush1.bf16.msra.mxu0 %v1007
      %1011 = vmatprep.subr.bf16.mxu0 0
      %1012 = vmatpush1.bf16.msra.mxu0 0
      %1013 = vmatprep.subr.bf16.mxu0 0
      %1014 = vmatpush1.bf16.msra.mxu0 0
      %1015 = vmatprep.subr.bf16.mxu0 0
      %1016 = vmatpush1.bf16.msra.mxu0 0
      %1017 = vmatprep.subr.bf16.mxu0 0
      %1018 = vmatpush1.bf16.msra.mxu0 0
      %1019 = vmatprep.subr.bf16.mxu0 0
      %1020 = vmatpush1.bf16.msra.mxu0 0
      %1021 = vmatprep.subr.bf16.mxu0 0
      %1022 = vmatpush1.bf16.msra.mxu0 0
      %1023 = vmatprep.subr.bf16.mxu0 0
      %1024 = vmatpush1.bf16.msra.mxu0 0
      %1025 = vmatprep.subr.bf16.mxu0 0
      %1026 = vmatpush1.bf16.msra.mxu0 0
      %1027 = vmatprep.subr.bf16.mxu0 0
      %1028 = vmatpush1.bf16.msra.mxu0 0
      %1029 = vmatprep.subr.bf16.mxu0 0
      %1030 = vmatpush1.bf16.msra.mxu0 0
      %1031 = vmatprep.subr.bf16.mxu0 0
      %1032 = vmatpush1.bf16.msra.mxu0 0
      %1033 = vmatprep.subr.bf16.mxu0 0
      %1034 = vmatpush1.bf16.msra.mxu0 0
      %1035 = vmatprep.subr.bf16.mxu0 0
      %1036 = vmatpush1.bf16.msra.mxu0 0
      %1037 = vmatprep.subr.bf16.mxu0 0
      %1038 = vmatpush1.bf16.msra.mxu0 0
      %1039 = vmatprep.subr.bf16.mxu0 0
      %1040 = vmatpush1.bf16.msra.mxu0 0
      %1041 = vmatprep.mubr.bf16.mxu0 0
      %1042 = vmatmul.mubr.bf16.gmra.mrb[0].mxu0 %v1004
      %v1043 = vpop.f32.mrb[0].mxu0
      %v1044 = vadd.f32 0.0, %v1043
      %v1045 = vpop.f32.mrb[0].mxu0
      %v1046 = vpop.f32.mrb[0].mxu0
      %v1047 = vpop.f32.mrb[0].mxu0
      %1048 = vdwg.mxu0
      %v1050 = vsel %vm723, %v954, 0
      %v1053 = vsel %vm959, %v721, 0
      %1055 = vmatprep.subr.bf16.mxu0 0
      %1056 = vmatpush1.bf16.msra.mxu0 %v1053
      %1057 = vmatprep.subr.bf16.mxu0 0
      %1058 = vmatpush1.bf16.msra.mxu0 0
      %1059 = vmatprep.subr.bf16.mxu0 0
      %1060 = vmatpush1.bf16.msra.mxu0 0
      %1061 = vmatprep.subr.bf16.mxu0 0
      %1062 = vmatpush1.bf16.msra.mxu0 0
      %1063 = vmatprep.subr.bf16.mxu0 0
      %1064 = vmatpush1.bf16.msra.mxu0 0
      %1065 = vmatprep.subr.bf16.mxu0 0
      %1066 = vmatpush1.bf16.msra.mxu0 0
      %1067 = vmatprep.subr.bf16.mxu0 0
      %1068 = vmatpush1.bf16.msra.mxu0 0
      %1069 = vmatprep.subr.bf16.mxu0 0
      %1070 = vmatpush1.bf16.msra.mxu0 0
      %1071 = vmatprep.subr.bf16.mxu0 0
      %1072 = vmatpush1.bf16.msra.mxu0 0
      %1073 = vmatprep.subr.bf16.mxu0 0
      %1074 = vmatpush1.bf16.msra.mxu0 0
      %1075 = vmatprep.subr.bf16.mxu0 0
      %1076 = vmatpush1.bf16.msra.mxu0 0
      %1077 = vmatprep.subr.bf16.mxu0 0
      %1078 = vmatpush1.bf16.msra.mxu0 0
      %1079 = vmatprep.subr.bf16.mxu0 0
      %1080 = vmatpush1.bf16.msra.mxu0 0
      %1081 = vmatprep.subr.bf16.mxu0 0
      %1082 = vmatpush1.bf16.msra.mxu0 0
      %1083 = vmatprep.subr.bf16.mxu0 0
      %1084 = vmatpush1.bf16.msra.mxu0 0
      %1085 = vmatprep.subr.bf16.mxu0 0
      %1086 = vmatpush1.bf16.msra.mxu0 0
      %1087 = vmatprep.mubr.bf16.mxu0 0
      %1088 = vmatmul.mubr.bf16.gmra.mrb[0].mxu0 %v1050
      %v1089 = vpop.f32.mrb[0].mxu0
      %v1090 = vadd.f32 0.0, %v1089
      %v1091 = vpop.f32.mrb[0].mxu0
      %v1092 = vpop.f32.mrb[0].mxu0
      %v1093 = vpop.f32.mrb[0].mxu0
      %1094 = vdwg.mxu0
      %v1096 = vsel %vm723, %v955, 0
      %v1099 = vsel %vm959, %v722, 0
      %1101 = vmatprep.subr.bf16.mxu0 0
      %1102 = vmatpush1.bf16.msra.mxu0 %v1099
      %1103 = vmatprep.subr.bf16.mxu0 0
      %1104 = vmatpush1.bf16.msra.mxu0 0
      %1105 = vmatprep.subr.bf16.mxu0 0
      %1106 = vmatpush1.bf16.msra.mxu0 0
      %1107 = vmatprep.subr.bf16.mxu0 0
      %1108 = vmatpush1.bf16.msra.mxu0 0
      %1109 = vmatprep.subr.bf16.mxu0 0
      %1110 = vmatpush1.bf16.msra.mxu0 0
      %1111 = vmatprep.subr.bf16.mxu0 0
      %1112 = vmatpush1.bf16.msra.mxu0 0
      %1113 = vmatprep.subr.bf16.mxu0 0
      %1114 = vmatpush1.bf16.msra.mxu0 0
      %1115 = vmatprep.subr.bf16.mxu0 0
      %1116 = vmatpush1.bf16.msra.mxu0 0
      %1117 = vmatprep.subr.bf16.mxu0 0
      %1118 = vmatpush1.bf16.msra.mxu0 0
      %1119 = vmatprep.subr.bf16.mxu0 0
      %1120 = vmatpush1.bf16.msra.mxu0 0
      %1121 = vmatprep.subr.bf16.mxu0 0
      %1122 = vmatpush1.bf16.msra.mxu0 0
      %1123 = vmatprep.subr.bf16.mxu0 0
      %1124 = vmatpush1.bf16.msra.mxu0 0
      %1125 = vmatprep.subr.bf16.mxu0 0
      %1126 = vmatpush1.bf16.msra.mxu0 0
      %1127 = vmatprep.subr.bf16.mxu0 0
      %1128 = vmatpush1.bf16.msra.mxu0 0
      %1129 = vmatprep.subr.bf16.mxu0 0
      %1130 = vmatpush1.bf16.msra.mxu0 0
      %1131 = vmatprep.subr.bf16.mxu0 0
      %1132 = vmatpush1.bf16.msra.mxu0 0
      %1133 = vmatprep.mubr.bf16.mxu0 0
      %1134 = vmatmul.mubr.bf16.gmra.mrb[0].mxu0 %v1096
      %v1135 = vpop.f32.mrb[0].mxu0
      %v1136 = vadd.f32 0.0, %v1135
      %v1137 = vpop.f32.mrb[0].mxu0
      %v1138 = vpop.f32.mrb[0].mxu0
      %v1139 = vpop.f32.mrb[0].mxu0
      %1140 = vdwg.mxu0
      %v1141 = vpack.c.bf16 %v998, %v998
      %v1142 = vpack.c.bf16 %v1044, %v1044
      %v1143 = vpack.c.bf16 %v1090, %v1090
      %v1144 = vpack.c.bf16 %v1136, %v1136
      %v1145 = vld [vmem:[%s3] sm:$0xf]
      %v1146 = vld [vmem:[%s3 + $0x4] sm:$0xf]
      %v1147 = vld [vmem:[%s3 + $0x8] sm:$0xf]
      %v1148 = vld [vmem:[%s3 + $0xc] sm:$0xf]
      %v1150 = vsel %vm723, %v1141, 0
      %v1153 = vsel %vm959, %v1145, 0
      %1155 = vmatprep.subr.bf16.mxu0 0
      %1156 = vmatpush1.bf16.msra.mxu0 %v1153
      %1157 = vmatprep.subr.bf16.mxu0 0
      %1158 = vmatpush1.bf16.msra.mxu0 0
      %1159 = vmatprep.subr.bf16.mxu0 0
      %1160 = vmatpush1.bf16.msra.mxu0 0
      %1161 = vmatprep.subr.bf16.mxu0 0
      %1162 = vmatpush1.bf16.msra.mxu0 0
      %1163 = vmatprep.subr.bf16.mxu0 0
      %1164 = vmatpush1.bf16.msra.mxu0 0
      %1165 = vmatprep.subr.bf16.mxu0 0
      %1166 = vmatpush1.bf16.msra.mxu0 0
      %1167 = vmatprep.subr.bf16.mxu0 0
      %1168 = vmatpush1.bf16.msra.mxu0 0
      %1169 = vmatprep.subr.bf16.mxu0 0
      %1170 = vmatpush1.bf16.msra.mxu0 0
      %1171 = vmatprep.subr.bf16.mxu0 0
      %1172 = vmatpush1.bf16.msra.mxu0 0
      %1173 = vmatprep.subr.bf16.mxu0 0
      %1174 = vmatpush1.bf16.msra.mxu0 0
      %1175 = vmatprep.subr.bf16.mxu0 0
      %1176 = vmatpush1.bf16.msra.mxu0 0
      %1177 = vmatprep.subr.bf16.mxu0 0
      %1178 = vmatpush1.bf16.msra.mxu0 0
      %1179 = vmatprep.subr.bf16.mxu0 0
      %1180 = vmatpush1.bf16.msra.mxu0 0
      %1181 = vmatprep.subr.bf16.mxu0 0
      %1182 = vmatpush1.bf16.msra.mxu0 0
      %1183 = vmatprep.subr.bf16.mxu0 0
      %1184 = vmatpush1.bf16.msra.mxu0 0
      %1185 = vmatprep.subr.bf16.mxu0 0
      %1186 = vmatpush1.bf16.msra.mxu0 0
      %1187 = vmatprep.mubr.bf16.mxu0 0
      %1188 = vmatmul.mubr.bf16.gmra.mrb[0].mxu0 %v1150
      %v1189 = vpop.f32.mrb[0].mxu0
      %v1190 = vadd.f32 0.0, %v1189
      %v1191 = vpop.f32.mrb[0].mxu0
      %v1192 = vpop.f32.mrb[0].mxu0
      %v1193 = vpop.f32.mrb[0].mxu0
      %1194 = vdwg.mxu0
      %v1196 = vsel %vm723, %v1142, 0
      %v1199 = vsel %vm959, %v1146, 0
      %1201 = vmatprep.subr.bf16.mxu0 0
      %1202 = vmatpush1.bf16.msra.mxu0 %v1199
      %1203 = vmatprep.subr.bf16.mxu0 0
      %1204 = vmatpush1.bf16.msra.mxu0 0
      %1205 = vmatprep.subr.bf16.mxu0 0
      %1206 = vmatpush1.bf16.msra.mxu0 0
      %1207 = vmatprep.subr.bf16.mxu0 0
      %1208 = vmatpush1.bf16.msra.mxu0 0
      %1209 = vmatprep.subr.bf16.mxu0 0
      %1210 = vmatpush1.bf16.msra.mxu0 0
      %1211 = vmatprep.subr.bf16.mxu0 0
      %1212 = vmatpush1.bf16.msra.mxu0 0
      %1213 = vmatprep.subr.bf16.mxu0 0
      %1214 = vmatpush1.bf16.msra.mxu0 0
      %1215 = vmatprep.subr.bf16.mxu0 0
      %1216 = vmatpush1.bf16.msra.mxu0 0
      %1217 = vmatprep.subr.bf16.mxu0 0
      %1218 = vmatpush1.bf16.msra.mxu0 0
      %1219 = vmatprep.subr.bf16.mxu0 0
      %1220 = vmatpush1.bf16.msra.mxu0 0
      %1221 = vmatprep.subr.bf16.mxu0 0
      %1222 = vmatpush1.bf16.msra.mxu0 0
      %1223 = vmatprep.subr.bf16.mxu0 0
      %1224 = vmatpush1.bf16.msra.mxu0 0
      %1225 = vmatprep.subr.bf16.mxu0 0
      %1226 = vmatpush1.bf16.msra.mxu0 0
      %1227 = vmatprep.subr.bf16.mxu0 0
      %1228 = vmatpush1.bf16.msra.mxu0 0
      %1229 = vmatprep.subr.bf16.mxu0 0
      %1230 = vmatpush1.bf16.msra.mxu0 0
      %1231 = vmatprep.subr.bf16.mxu0 0
      %1232 = vmatpush1.bf16.msra.mxu0 0
      %1233 = vmatprep.mubr.bf16.mxu0 0
      %1234 = vmatmul.mubr.bf16.gmra.mrb[0].mxu0 %v1196
      %v1235 = vpop.f32.mrb[0].mxu0
      %v1236 = vadd.f32 0.0, %v1235
      %v1237 = vpop.f32.mrb[0].mxu0
      %v1238 = vpop.f32.mrb[0].mxu0
      %v1239 = vpop.f32.mrb[0].mxu0
      %1240 = vdwg.mxu0
      %v1242 = vsel %vm723, %v1143, 0
      %v1245 = vsel %vm959, %v1147, 0
      %1247 = vmatprep.subr.bf16.mxu0 0
      %1248 = vmatpush1.bf16.msra.mxu0 %v1245
      %1249 = vmatprep.subr.bf16.mxu0 0
      %1250 = vmatpush1.bf16.msra.mxu0 0
      %1251 = vmatprep.subr.bf16.mxu0 0
      %1252 = vmatpush1.bf16.msra.mxu0 0
      %1253 = vmatprep.subr.bf16.mxu0 0
      %1254 = vmatpush1.bf16.msra.mxu0 0
      %1255 = vmatprep.subr.bf16.mxu0 0
      %1256 = vmatpush1.bf16.msra.mxu0 0
      %1257 = vmatprep.subr.bf16.mxu0 0
      %1258 = vmatpush1.bf16.msra.mxu0 0
      %1259 = vmatprep.subr.bf16.mxu0 0
      %1260 = vmatpush1.bf16.msra.mxu0 0
      %1261 = vmatprep.subr.bf16.mxu0 0
      %1262 = vmatpush1.bf16.msra.mxu0 0
      %1263 = vmatprep.subr.bf16.mxu0 0
      %1264 = vmatpush1.bf16.msra.mxu0 0
      %1265 = vmatprep.subr.bf16.mxu0 0
      %1266 = vmatpush1.bf16.msra.mxu0 0
      %1267 = vmatprep.subr.bf16.mxu0 0
      %1268 = vmatpush1.bf16.msra.mxu0 0
      %1269 = vmatprep.subr.bf16.mxu0 0
      %1270 = vmatpush1.bf16.msra.mxu0 0
      %1271 = vmatprep.subr.bf16.mxu0 0
      %1272 = vmatpush1.bf16.msra.mxu0 0
      %1273 = vmatprep.subr.bf16.mxu0 0
      %1274 = vmatpush1.bf16.msra.mxu0 0
      %1275 = vmatprep.subr.bf16.mxu0 0
      %1276 = vmatpush1.bf16.msra.mxu0 0
      %1277 = vmatprep.subr.bf16.mxu0 0
      %1278 = vmatpush1.bf16.msra.mxu0 0
      %1279 = vmatprep.mubr.bf16.mxu0 0
      %1280 = vmatmul.mubr.bf16.gmra.mrb[0].mxu0 %v1242
      %v1281 = vpop.f32.mrb[0].mxu0
      %v1282 = vadd.f32 0.0, %v1281
      %v1283 = vpop.f32.mrb[0].mxu0
      %v1284 = vpop.f32.mrb[0].mxu0
      %v1285 = vpop.f32.mrb[0].mxu0
      %1286 = vdwg.mxu0
      %v1288 = vsel %vm723, %v1144, 0
      %v1291 = vsel %vm959, %v1148, 0
      %1293 = vmatprep.subr.bf16.mxu0 0
      %1294 = vmatpush1.bf16.msra.mxu0 %v1291
      %1295 = vmatprep.subr.bf16.mxu0 0
      %1296 = vmatpush1.bf16.msra.mxu0 0
      %1297 = vmatprep.subr.bf16.mxu0 0
      %1298 = vmatpush1.bf16.msra.mxu0 0
      %1299 = vmatprep.subr.bf16.mxu0 0
      %1300 = vmatpush1.bf16.msra.mxu0 0
      %1301 = vmatprep.subr.bf16.mxu0 0
      %1302 = vmatpush1.bf16.msra.mxu0 0
      %1303 = vmatprep.subr.bf16.mxu0 0
      %1304 = vmatpush1.bf16.msra.mxu0 0
      %1305 = vmatprep.subr.bf16.mxu0 0
      %1306 = vmatpush1.bf16.msra.mxu0 0
      %1307 = vmatprep.subr.bf16.mxu0 0
      %1308 = vmatpush1.bf16.msra.mxu0 0
      %1309 = vmatprep.subr.bf16.mxu0 0
      %1310 = vmatpush1.bf16.msra.mxu0 0
      %1311 = vmatprep.subr.bf16.mxu0 0
      %1312 = vmatpush1.bf16.msra.mxu0 0
      %1313 = vmatprep.subr.bf16.mxu0 0
      %1314 = vmatpush1.bf16.msra.mxu0 0
      %1315 = vmatprep.subr.bf16.mxu0 0
      %1316 = vmatpush1.bf16.msra.mxu0 0
      %1317 = vmatprep.subr.bf16.mxu0 0
      %1318 = vmatpush1.bf16.msra.mxu0 0
      %1319 = vmatprep.subr.bf16.mxu0 0
      %1320 = vmatpush1.bf16.msra.mxu0 0
      %1321 = vmatprep.subr.bf16.mxu0 0
      %1322 = vmatpush1.bf16.msra.mxu0 0
      %1323 = vmatprep.subr.bf16.mxu0 0
      %1324 = vmatpush1.bf16.msra.mxu0 0
      %1325 = vmatprep.mubr.bf16.mxu0 0
      %1326 = vmatmul.mubr.bf16.gmra.mrb[0].mxu0 %v1288
      %v1327 = vpop.f32.mrb[0].mxu0
      %v1328 = vadd.f32 0.0, %v1327
      %v1329 = vpop.f32.mrb[0].mxu0
      %v1330 = vpop.f32.mrb[0].mxu0
      %v1331 = vpop.f32.mrb[0].mxu0
      %1332 = vdwg.mxu0
      %v1333 = vsel %vm494, %v1190, 0.0
      %v1334 = vsel %vm494, %v1236, 0.0
      %v1335 = vadd.f32 %v1333, %v1334
      %v1336 = vsel %vm494, %v1282, 0.0
      %v1337 = vadd.f32 %v1335, %v1336
      %v1338 = vsel %vm494, %v1328, 0.0
      %v1339 = vadd.f32 %v1337, %v1338
      %v1340 = vld [vmem:[%s4] sm:$0x1]
      %v1342 = vlaneseq
      %v1343 = vshrl.u32 %v1342, 7
      %v1344 = vsub.s32 0, %v1343
      %v1345 = vrot.slane %v1340, %v1344
      %v1347 = vadd.f32 %v1339, %v1345
      %v1348 = vadd.f32 %v491, %v1347
      %v1349 = vld [vmem:[%s11] sm:$0x1]
      %v1350 = vld [vmem:[%s12] sm:$0x1]
      %v1351 = vsel %vm494, %v1348, 0.0
      %1352 = vadd.xlane.f32.xlu0 %v1351
      %v1353 = vpop.xlane.xlu0 %1352
      %v1354 = vmul.f32 %v1353, %v498
      %v1355 = vsub.f32 %v1348, %v1354
      %v1356 = vmul.f32 %v1355, %v1355
      %v1357 = vsel %vm494, %v1356, 0.0
      %1358 = vadd.xlane.f32.xlu0 %v1357
      %v1359 = vpop.xlane.xlu0 %1358
      %v1360 = vmul.f32 %v1359, %v498
      %v1361 = vadd.f32 %v1360, 1e-06
      %v1362 = vrsqrt.pop %v1361
      %v1363 = vmul.f32 %v1355, %v1362
      %v1365 = vlaneseq
      %v1366 = vshrl.u32 %v1365, 7
      %v1367 = vsub.s32 0, %v1366
      %v1368 = vrot.slane %v1349, %v1367
      %v1370 = vmul.f32 %v1363, %v1368
      %v1372 = vlaneseq
      %v1373 = vshrl.u32 %v1372, 7
      %v1374 = vsub.s32 0, %v1373
      %v1375 = vrot.slane %v1350, %v1374
      %v1377 = vadd.f32 %v1370, %v1375
      %v1378 = vpack.c.bf16 %v1377, %v1377
      %v1379 = vld [vmem:[%s7] sm:$0xf]
      %v1380 = vld [vmem:[%s7 + $0x4] sm:$0xf]
      %v1381 = vld [vmem:[%s7 + $0x8] sm:$0xf]
      %v1382 = vld [vmem:[%s7 + $0xc] sm:$0xf]
      %v1383 = vld [vmem:[%s8] sm:$0x1]
      %v1385 = vlaneseq
      %v1386 = vshrl.u32 %v1385, 7
      %v1387 = vsub.s32 0, %v1386
      %v1388 = vrot.slane %v1383, %v1387
      %v1394 = vunpack.c.l.b16 %v1379
      %v1395 = vunpack.c.l.b16 %v1380
      %v1396 = vunpack.c.l.b16 %v1381
      %v1397 = vunpack.c.l.b16 %v1382
      %v1398 = vpack.c.b16 %v1395, %v1394
      %v1399 = vpack.c.b16 %v1397, %v1396
      %v1403 = vsel %vm494, %v1378, 0
      %1405 = vmatprep.subr.bf16.mxu0 0
      %1406 = vmatpush1.bf16.msra.mxu0 %v1398
      %1407 = vmatprep.subr.bf16.mxu0 0
      %1408 = vmatpush1.bf16.msra.mxu0 %v1399
      %1409 = vmatprep.subr.bf16.mxu0 0
      %1410 = vmatpush1.bf16.msra.mxu0 0
      %1411 = vmatprep.subr.bf16.mxu0 0
      %1412 = vmatpush1.bf16.msra.mxu0 0
      %1413 = vmatprep.subr.bf16.mxu0 0
      %1414 = vmatpush1.bf16.msra.mxu0 0
      %1415 = vmatprep.subr.bf16.mxu0 0
      %1416 = vmatpush1.bf16.msra.mxu0 0
      %1417 = vmatprep.subr.bf16.mxu0 0
      %1418 = vmatpush1.bf16.msra.mxu0 0
      %1419 = vmatprep.subr.bf16.mxu0 0
      %1420 = vmatpush1.bf16.msra.mxu0 0
      %1421 = vmatprep.subr.bf16.mxu0 0
      %1422 = vmatpush1.bf16.msra.mxu0 0
      %1423 = vmatprep.subr.bf16.mxu0 0
      %1424 = vmatpush1.bf16.msra.mxu0 0
      %1425 = vmatprep.subr.bf16.mxu0 0
      %1426 = vmatpush1.bf16.msra.mxu0 0
      %1427 = vmatprep.subr.bf16.mxu0 0
      %1428 = vmatpush1.bf16.msra.mxu0 0
      %1429 = vmatprep.subr.bf16.mxu0 0
      %1430 = vmatpush1.bf16.msra.mxu0 0
      %1431 = vmatprep.subr.bf16.mxu0 0
      %1432 = vmatpush1.bf16.msra.mxu0 0
      %1433 = vmatprep.subr.bf16.mxu0 0
      %1434 = vmatpush1.bf16.msra.mxu0 0
      %1435 = vmatprep.subr.bf16.mxu0 0
      %1436 = vmatpush1.bf16.msra.mxu0 0
      %1437 = vmatprep.mubr.bf16.mxu0 0
      %1438 = vmatmul.mubr.bf16.gmra.mrb[0].mxu0 %v1403
      %v1439 = vpop.f32.mrb[0].mxu0
      %v1440 = vadd.f32 %v1388, %v1439
      %v1441 = vpop.f32.mrb[0].mxu0
      %v1442 = vpop.f32.mrb[0].mxu0
      %v1443 = vpop.f32.mrb[0].mxu0
      %1444 = vdwg.mxu0
      %v1445 = vmax.f32 %v1440, 0.0
      %v1446 = vpack.c.bf16 %v1445, %v1445
      %v1447 = vld [vmem:[%s9] sm:$0xf]
      %v1448 = vld [vmem:[%s9 + $0x4] sm:$0xf]
      %v1449 = vld [vmem:[%s9 + $0x8] sm:$0xf]
      %v1450 = vld [vmem:[%s9 + $0xc] sm:$0xf]
      %v1451 = vld [vmem:[%s9 + $0x10] sm:$0xf]
      %v1452 = vld [vmem:[%s9 + $0x14] sm:$0xf]
      %v1453 = vld [vmem:[%s9 + $0x18] sm:$0xf]
      %v1454 = vld [vmem:[%s9 + $0x1c] sm:$0xf]
      %v1455 = vld [vmem:[%s10] sm:$0x1]
      %v1457 = vlaneseq
      %v1458 = vshrl.u32 %v1457, 7
      %v1459 = vsub.s32 0, %v1458
      %v1460 = vrot.slane %v1455, %v1459
      %v1470 = vunpack.c.l.b16 %v1447
      %v1471 = vunpack.c.l.b16 %v1448
      %v1472 = vunpack.c.l.b16 %v1449
      %v1473 = vunpack.c.l.b16 %v1450
      %v1474 = vunpack.c.l.b16 %v1451
      %v1475 = vunpack.c.l.b16 %v1452
      %v1476 = vunpack.c.l.b16 %v1453
      %v1477 = vunpack.c.l.b16 %v1454
      %v1478 = vpack.c.b16 %v1471, %v1470
      %v1479 = vpack.c.b16 %v1473, %v1472
      %v1480 = vpack.c.b16 %v1475, %v1474
      %v1481 = vpack.c.b16 %v1477, %v1476
      %vm1486 = vcmask 523264
      %v1488 = vsel %vm1486, %v1446, 0
      %1490 = vmatprep.subr.bf16.mxu0 0
      %1491 = vmatpush1.bf16.msra.mxu0 %v1478
      %1492 = vmatprep.subr.bf16.mxu0 0
      %1493 = vmatpush1.bf16.msra.mxu0 %v1479
      %1494 = vmatprep.subr.bf16.mxu0 0
      %1495 = vmatpush1.bf16.msra.mxu0 %v1480
      %1496 = vmatprep.subr.bf16.mxu0 0
      %1497 = vmatpush1.bf16.msra.mxu0 %v1481
      %1498 = vmatprep.subr.bf16.mxu0 0
      %1499 = vmatpush1.bf16.msra.mxu0 0
      %1500 = vmatprep.subr.bf16.mxu0 0
      %1501 = vmatpush1.bf16.msra.mxu0 0
      %1502 = vmatprep.subr.bf16.mxu0 0
      %1503 = vmatpush1.bf16.msra.mxu0 0
      %1504 = vmatprep.subr.bf16.mxu0 0
      %1505 = vmatpush1.bf16.msra.mxu0 0
      %1506 = vmatprep.subr.bf16.mxu0 0
      %1507 = vmatpush1.bf16.msra.mxu0 0
      %1508 = vmatprep.subr.bf16.mxu0 0
      %1509 = vmatpush1.bf16.msra.mxu0 0
      %1510 = vmatprep.subr.bf16.mxu0 0
      %1511 = vmatpush1.bf16.msra.mxu0 0
      %1512 = vmatprep.subr.bf16.mxu0 0
      %1513 = vmatpush1.bf16.msra.mxu0 0
      %1514 = vmatprep.subr.bf16.mxu0 0
      %1515 = vmatpush1.bf16.msra.mxu0 0
      %1516 = vmatprep.subr.bf16.mxu0 0
      %1517 = vmatpush1.bf16.msra.mxu0 0
      %1518 = vmatprep.subr.bf16.mxu0 0
      %1519 = vmatpush1.bf16.msra.mxu0 0
      %1520 = vmatprep.subr.bf16.mxu0 0
      %1521 = vmatpush1.bf16.msra.mxu0 0
      %1522 = vmatprep.mubr.bf16.mxu0 0
      %1523 = vmatmul.mubr.bf16.gmra.mrb[0].mxu0 %v1488
      %v1524 = vpop.f32.mrb[0].mxu0
      %v1525 = vadd.f32 %v1460, %v1524
      %v1526 = vpop.f32.mrb[0].mxu0
      %v1527 = vpop.f32.mrb[0].mxu0
      %v1528 = vpop.f32.mrb[0].mxu0
      %1529 = vdwg.mxu0
      %v1530 = vadd.f32 %v1348, %v1525
      %1531 = vst.msk [vmem:[%s489] sm:$0xff] %vm494, %v1530
      %p1532 = scmp.lt.s32.totalorder %s26, 1
      %s1533 = scalar_select %p1532, %s26, 1
      %s1534 = smul.addr %s1533, 8
      %s1535 = scalar_lea.vmem %s15, %s1534
      // Predicated region
      $region81: #{transformer_forward.3} parent=79 // pred_check
        %p1536 = pneg %p364
      $region82: #{transformer_forward.3} parent=79 // pred_check_branch
        %1538 = sbr.rel (%p1536) target = $region84
      $region83: #{transformer_forward.3} parent=79 // pred_region
        _
      $region84: #{transformer_forward.3} parent=79 // pred_fallthru
        _
    $region80: #{transformer_forward.3} parent=5 // pred_fallthru
      _
    %p1539 = scmp.le.s32.totalorder 2, %s21
    // Predicated region
    $region85: #{transformer_forward.3} parent=5 // pred_check
      %p1540 = pneg %p1539
    $region86: #{transformer_forward.3} parent=5 // pred_check_branch
      %1542 = sbr.rel (%p1540) target = $region88
    $region87: #{transformer_forward.3} parent=5 // pred_region
      %s1543 = ssub.s32 %s21, 2
      // Predicated region
      $region89: #{transformer_forward.3} parent=87 // pred_check
        %p1544 = pneg %p370
      $region90: #{transformer_forward.3} parent=87 // pred_check_branch
        %1546 = sbr.rel (%p1544) target = $region92
      $region91: #{transformer_forward.3} parent=87 // pred_region
        %p1547 = scmp.lt.s32.totalorder %s27, 1
        %s1548 = scalar_select %p1547, %s27, 1
        %s1549 = smul.addr %s1548, 8
        %s1550 = scalar_lea.vmem %s15, %s1549
      $region92: #{transformer_forward.3} parent=87 // pred_fallthru
        _
    $region88: #{transformer_forward.3} parent=5 // pred_fallthru
      _
  $region6: #{transformer_forward.3} parent=0 // loop_footer
    %s25 = sadd.s32 1, %s21
  $region7: #{transformer_forward.3} parent=0 // loop_footer_branch
    %20 = sbr.rel target = $region3
  $region8: #{transformer_forward.3} parent=0 // loop_exit
    _

</llo_original>
